<compile_context>
chip_gen: v5e
topology: v5e:2x2
jax: 0.10.0
libtpu: 0.0.40
codegen_flags: <defaults>
</compile_context>

<pallas_src>
import numpy as np
import jax
import jax.numpy as jnp
from jax import lax
from jax.experimental import pallas as pl
from jax.experimental.pallas import tpu as pltpu

NEG = np.float32(-1e30)   # finite stand-in for -inf (avoids inf/nan arithmetic on TPU)
LANES = 128               # padded extended-label axis = one vreg row
BATCH = 16                # CTC samples per grid step (2 alpha vregs -> ILP in the time loop)

LAMBDA_REG = 1.0
LAMBDA_ANGLE = 10.0
LAMBDA_RECOG = 1.0


def _round_up(x, m):
    return -(-x // m) * m


# ============================ Recognition (CTC) ============================

def _make_ctc_kernel(T, TP, C, S, B):
    """T: time steps, TP: sublane-aligned scratch stride, C: classes (padded to 8),
    S: max target length, B: samples per grid step."""
    L = 2 * S + 1
    assert L <= LANES - 2, "extended label sequence must fit in one padded vreg row"

    def kernel(in_len_ref, tgt_len_ref, tgt_ref, logp_ref, out_ref, lp_scr):
        in_len = in_len_ref[...]              # (B, 1) int32 input (time) lengths
        tgt_len = tgt_len_ref[...]            # (B, 1) int32 target lengths

        pos = lax.broadcasted_iota(jnp.int32, (B, LANES), 1)

        # Extended label sequence per sample: blank, y1, blank, ..., yS, blank ; -1 on pad lanes.
        ext = jnp.where((pos % 2 == 0) & (pos < L), 0, -1)
        for j in range(S):                                   # S is small & static
            ext = jnp.where(pos == 2 * j + 1, tgt_ref[:, j:j + 1], ext)

        # Gather lp[b, t, s] = logp[b, t, ext[b, s]] via one one-hot MXU matmul per sample;
        # rows for sample b are stored time-contiguously at b*TP + t.
        cls = lax.broadcasted_iota(jnp.int32, (C, LANES), 0)
        for b in range(B):                                   # static, B = 16
            ext_b = ext[b:b + 1, :]                          # (1, LANES)
            onehot = (cls == ext_b).astype(jnp.float32)      # (C, LANES)
            lp_b = jnp.dot(logp_ref[b].astype(jnp.float32), onehot,
                           preferred_element_type=jnp.float32)   # (T, LANES) on the MXU
            lp_b = jnp.where(ext_b < 0, NEG, lp_b)           # NEG on pad lanes
            lp_scr[b * TP:b * TP + T, :] = lp_b              # contiguous per-sample store

        # frame-0 rows of all samples: one sublane-strided load
        lp0 = lp_scr[pl.ds(0, B, stride=TP), :]

        ext_m2 = pltpu.roll(ext, 2, 1)                               # ext[s-2]
        allow_skip = (pos >= 2) & (ext > 0) & (ext != ext_m2)        # CTC skip condition
        end_mask = (pos == 2 * tgt_len) | (pos == 2 * tgt_len - 1)   # final states per sample

        alpha0 = jnp.where(pos <= 1, lp0, NEG)

        def body(t, alpha):
            a1 = pltpu.roll(alpha, 1, 1)                               # alpha[s-1]
            a2 = jnp.where(allow_skip, pltpu.roll(alpha, 2, 1), NEG)   # alpha[s-2]
            m = jnp.maximum(jnp.maximum(alpha, a1), a2)
            lse = m + jnp.log(jnp.exp(alpha - m) + jnp.exp(a1 - m) + jnp.exp(a2 - m))
            # ONE strided load per step: rows b*TP + t for b = 0..B-1
            lp_t = lp_scr[pl.ds(t, B, stride=TP), :]
            new_alpha = jnp.maximum(lse + lp_t, NEG)
            # freeze each sample once its own input length is exhausted
            return jnp.where(t < in_len, new_alpha, alpha)

        # bound the serial loop by the block's real max input length (<= T)
        t_max = jnp.minimum(jnp.max(in_len), T)
        alpha_final = lax.fori_loop(1, t_max, body, alpha0)

        # Readout: logsumexp over the two final states (hoisted out of the time loop).
        vals = jnp.where(end_mask, alpha_final, NEG)
        m = jnp.max(vals, axis=-1, keepdims=True)
        ll = m + jnp.log(jnp.sum(jnp.exp(vals - m), axis=-1, keepdims=True))   # (B, 1)

        loss = -ll
        # zero_infinity=True: infeasible alignments show up as ~1e30 (our -inf proxy) -> zero them.
        loss = jnp.where(loss >= jnp.float32(1e29), 0.0, loss)
        loss = jnp.where(in_len >= 1, loss, 0.0)             # zero-length input -> 0
        denom = jnp.maximum(tgt_len, 1).astype(jnp.float32)
        out_ref[...] = loss / denom                          # reduction='mean' numerator

    return kernel


def recognition_loss(indexed_tokens_pred, seq_lens_pred, indexed_tokens_true, seq_lens_true):
    """CTCLoss(blank=0, reduction='mean', zero_infinity=True).

    indexed_tokens_pred : (T, N, C) float log-probabilities
    seq_lens_pred       : (N,) int input lengths
    indexed_tokens_true : (N, S) int padded targets (labels in [1, C-1])
    seq_lens_true       : (N,) int target lengths
    """
    T, N, C = indexed_tokens_pred.shape
    S = indexed_tokens_true.shape[1]
    B = BATCH
    TP = _round_up(T, 8)          # scratch row stride only (time itself is NOT padded)
    CP = _round_up(C, 8)          # classes padded to a sublane multiple (matmul K dim)
    NPAD = _round_up(N, B)        # batch padded to whole B-sample blocks

    # (T, N, C) -> (N, T, C); pad batch & classes in one fused copy.  Time unpadded,
    # dtype untouched (upcast happens in-kernel).
    logp = jnp.transpose(indexed_tokens_pred, (1, 0, 2))
    logp = jnp.pad(logp, ((0, NPAD - N), (0, 0), (0, CP - C)))
    # TODO(synk): the transpose could be removed entirely by consuming (T, N, C) with a
    # (T, B, CP) block and an in-kernel per-sample strided slice; kept for lowering safety.

    in_len = jnp.pad(seq_lens_pred.astype(jnp.int32), (0, NPAD - N),
                     constant_values=1).reshape(NPAD, 1)
    tgt_len = jnp.pad(seq_lens_true.astype(jnp.int32), (0, NPAD - N),
                      constant_values=1).reshape(NPAD, 1)
    tgt = jnp.pad(indexed_tokens_true.astype(jnp.int32), ((0, NPAD - N), (0, 0)),
                  constant_values=1)

    kernel = _make_ctc_kernel(T, TP, CP, S, B)
    per_sample = pl.pallas_call(
        kernel,
        out_shape=jax.ShapeDtypeStruct((NPAD, 1), jnp.float32),
        grid_spec=pltpu.PrefetchScalarGridSpec(
            num_scalar_prefetch=0,
            grid=(NPAD // B,),
            in_specs=[
                pl.BlockSpec((B, 1), lambda n: (n, 0)),          # input lengths
                pl.BlockSpec((B, 1), lambda n: (n, 0)),          # target lengths
                pl.BlockSpec((B, S), lambda n: (n, 0)),          # targets
                pl.BlockSpec((B, T, CP), lambda n: (n, 0, 0)),   # log-probs (batch-major)
            ],
            out_specs=pl.BlockSpec((B, 1), lambda n: (n, 0)),
            scratch_shapes=[pltpu.VMEM((B * TP, LANES), jnp.float32)],
        ),
        compiler_params=pltpu.CompilerParams(dimension_semantics=("parallel",)),
    )(in_len, tgt_len, tgt, logp)

    # reduction='mean': per-sample loss / target_len already done in-kernel; mean over batch here.
    return jnp.sum(per_sample[:N, 0]) / np.float32(N)


# ============================== Detection loss ==============================

def _pick_block_rows(R, cap=512):
    """Rows-of-128 per grid step: must divide R and be a sublane multiple (or == R)."""
    if R <= cap:
        return R
    for d in range(cap - cap % 8, 7, -8):
        if R % d == 0:
            return d
    return R   # no friendly divisor: single full-height block


def _make_det_kernel(BR, lambda_angle):
    lam = np.float32(lambda_angle)
    fold8 = (BR % 8 == 0)

    def _fold(x):
        # fold a (BR,128) tile into the (8,128) accumulator shape with VPU adds only
        if fold8:
            return x.reshape(BR // 8, 8, 128).sum(axis=0)
        return jnp.sum(x, axis=0, keepdims=True)      # tiny/odd tiles: (1,128)

    def _accum(ref, x):
        if fold8:
            ref[0] += _fold(x)
        else:
            ref[0, 0:1, :] += _fold(x)

    def kernel(sp_ref, st_ref, gp_ref, gt_ref, ap_ref, at_ref, mk_ref,
               cls_ref, reg_ref, npos_ref):
        @pl.when(pl.program_id(1) == 0)
        def _init():
            cls_ref[...] = jnp.zeros_like(cls_ref)
            reg_ref[...] = jnp.zeros_like(reg_ref)
            npos_ref[...] = jnp.zeros_like(npos_ref)

        f32 = jnp.float32
        sp = sp_ref[0].astype(f32)
        st = st_ref[0].astype(f32)
        mask = mk_ref[0].astype(f32)

        # binary_cross_entropy (reduction='none') with torch's log clamp at -100
        log_p = jnp.maximum(jnp.log(sp), -100.0)
        log_q = jnp.maximum(jnp.log(1.0 - sp), -100.0)
        bce = -(st * log_p + (1.0 - st) * log_q)

        # IoU loss (UnitBox)
        tp = gp_ref[0, 0].astype(f32)
        bp = gp_ref[0, 1].astype(f32)
        lp_ = gp_ref[0, 2].astype(f32)
        rp = gp_ref[0, 3].astype(f32)
        tt = gt_ref[0, 0].astype(f32)
        bt = gt_ref[0, 1].astype(f32)
        lt = gt_ref[0, 2].astype(f32)
        rt = gt_ref[0, 3].astype(f32)
        area_t = (tt + bt) * (lt + rt)
        area_p = (tp + bp) * (lp_ + rp)
        h_i = jnp.minimum(tt, tp) + jnp.minimum(bt, bp)
        w_i = jnp.minimum(lt, lp_) + jnp.minimum(rt, rp)
        a_i = h_i * w_i
        a_u = area_t + area_p - a_i
        l_iou = -jnp.log((a_i + 1.0) / (a_u + 1.0))

        # angle term computed in-kernel (huge VPU/EUP slack; saves HBM passes)
        cosd = jnp.cos(ap_ref[0].astype(f32) - at_ref[0].astype(f32))
        l_reg = l_iou + lam * (1.0 - cosd)

        _accum(cls_ref, bce * mask)
        _accum(reg_ref, l_reg * mask)
        _accum(npos_ref, mask)

    return kernel


def detection_loss(score_map_pred, geo_map_pred, angle_map_pred,
                   score_map_true, geo_map_true, angle_map_true, training_mask,
                   lambda_reg=LAMBDA_REG, lambda_angle=LAMBDA_ANGLE):
    N, _, H, W = score_map_pred.shape
    HW = H * W
    R = (HW + LANES - 1) // LANES           # 128-lane rows per image per channel

    def planes(x, ch):
        # native-layout view: free reshapes when H*W is a lane multiple
        x = x.reshape(N, ch, HW)
        if HW != R * LANES:
            x = jnp.pad(x, ((0, 0), (0, 0), (0, R * LANES - HW)))
        return x.reshape(N, R, LANES) if ch == 1 else x.reshape(N, ch, R, LANES)

    sp = planes(score_map_pred, 1)
    st = planes(score_map_true, 1)
    ap = planes(angle_map_pred, 1)
    at = planes(angle_map_true, 1)
    mk = planes(training_mask, 1)
    gp = planes(geo_map_pred, 4)
    gt = planes(geo_map_true, 4)

    BR = _pick_block_rows(R)
    grid = (N, R // BR)

    spec1 = pl.BlockSpec((1, BR, LANES), lambda n, i: (n, i, 0))
    spec4 = pl.BlockSpec((1, 4, BR, LANES), lambda n, i: (n, 0, i, 0))
    out_spec = pl.BlockSpec((1, 8, LANES), lambda n, i: (n, 0, 0))
    acc_shape = jax.ShapeDtypeStruct((N, 8, LANES), jnp.float32)

    s_cls, s_reg, s_np = pl.pallas_call(
        _make_det_kernel(BR, lambda_angle),
        out_shape=(acc_shape, acc_shape, acc_shape),
        grid_spec=pltpu.PrefetchScalarGridSpec(
            num_scalar_prefetch=0,
            grid=grid,
            in_specs=[spec1, spec1, spec4, spec4, spec1, spec1, spec1],
            out_specs=(out_spec, out_spec, out_spec),
        ),
        compiler_params=pltpu.CompilerParams(
            dimension_semantics=("parallel", "arbitrary")),
    )(sp, st, gp, gt, ap, at, mk)

    npos = jnp.sum(s_np)
    # TODO(synk): npos == 0 yields Inf/NaN, exactly matching the torch reference behavior.
    L_cls = jnp.sum(s_cls) / npos
    L_reg = jnp.sum(s_reg) / npos
    return {"cls_loss": L_cls, "reg_loss": L_reg,
            "detect_loss": L_cls + np.float32(lambda_reg) * L_reg}


# ================================ FOTS loss ================================

def fots_loss(score_map_pred, geo_map_pred, angle_map_pred,
              score_map_true, geo_map_true, angle_map_true, training_mask,
              indexed_tokens_pred, seq_lens_pred, indexed_tokens_true, seq_lens_true):
    det = detection_loss(score_map_pred, geo_map_pred, angle_map_pred,
                         score_map_true, geo_map_true, angle_map_true, training_mask)
    recog = recognition_loss(indexed_tokens_pred, seq_lens_pred,
                             indexed_tokens_true, seq_lens_true)
    total = det["detect_loss"] + np.float32(LAMBDA_RECOG) * recog
    return {"cls_loss": det["cls_loss"], "reg_loss": det["reg_loss"],
            "detect_loss": det["detect_loss"], "recog_loss": recog, "fots_loss": total}


# ---------------- pure numpy references (float64) for validation ----------------

def _logsumexp(vals):
    vals = np.asarray(vals, dtype=np.float64)
    m = np.max(vals)
    if np.isneginf(m):
        return -np.inf
    return m + np.log(np.sum(np.exp(vals - m)))


def ctc_loss_ref(log_probs, targets, input_lengths, target_lengths):
    T, N, C = log_probs.shape
    total = 0.0
    for b in range(N):
        Tn = int(input_lengths[b]); Sn = int(target_lengths[b])
        ext = np.zeros(2 * Sn + 1, dtype=np.int64)
        ext[1::2] = targets[b, :Sn]
        L = ext.shape[0]
        lp = log_probs[:, b, :]
        alpha = np.full(L, -np.inf)
        alpha[0] = lp[0, ext[0]]
        if L > 1:
            alpha[1] = lp[0, ext[1]]
        for t in range(1, Tn):
            new = np.full(L, -np.inf)
            for s in range(L):
                cands = [alpha[s]]
                if s >= 1:
                    cands.append(alpha[s - 1])
                if s >= 2 and ext[s] != 0 and ext[s] != ext[s - 2]:
                    cands.append(alpha[s - 2])
                new[s] = _logsumexp(cands) + lp[t, ext[s]]
            alpha = new
        ends = [alpha[L - 1]] + ([alpha[L - 2]] if L >= 2 else [])
        loss = -_logsumexp(ends)
        if np.isinf(loss):
            loss = 0.0
        total += loss / max(Sn, 1)
    return total / N


def detection_loss_ref(sp, gp, ap, st, gt, at, mask,
                       lambda_reg=LAMBDA_REG, lambda_angle=LAMBDA_ANGLE):
    sp, st, mask = [np.asarray(x, np.float64) for x in (sp, st, mask)]
    gp, gt, ap, at = [np.asarray(x, np.float64) for x in (gp, gt, ap, at)]

    def clog(v):
        return np.maximum(np.log(v), -100.0)

    bce = -(st * clog(sp) + (1.0 - st) * clog(1.0 - sp))
    tp, bp, lp_, rp = [gp[:, i:i + 1] for i in range(4)]
    tt, bt, lt, rt = [gt[:, i:i + 1] for i in range(4)]
    area_t = (tt + bt) * (lt + rt)
    area_p = (tp + bp) * (lp_ + rp)
    h_i = np.minimum(tt, tp) + np.minimum(bt, bp)
    w_i = np.minimum(lt, lp_) + np.minimum(rt, rp)
    a_i = h_i * w_i
    a_u = area_t + area_p - a_i
    l_iou = -np.log((a_i + 1.0) / (a_u + 1.0))
    l_reg = l_iou + lambda_angle * (1.0 - np.cos(ap - at))
    npos = mask.sum()
    L_cls = (bce * mask).sum() / npos
    L_reg = (l_reg * mask).sum() / npos
    return L_cls, L_reg, L_cls + lambda_reg * L_reg


if __name__ == "__main__":
    key = jax.random.PRNGKey(0)
    keys = jax.random.split(key, 10)

    # Detection inputs: N=2, H=W=16
    Nd, H, W = 2, 16, 16
    score_pred = jax.nn.sigmoid(jax.random.normal(keys[0], (Nd, 1, H, W), dtype=jnp.float32))
    score_true = (jax.random.uniform(keys[1], (Nd, 1, H, W)) > 0.5).astype(jnp.float32)
    geo_pred = jax.random.uniform(keys[2], (Nd, 4, H, W), minval=0.0, maxval=10.0)
    geo_true = jax.random.uniform(keys[3], (Nd, 4, H, W), minval=0.0, maxval=10.0)
    angle_pred = jax.random.uniform(keys[4], (Nd, 1, H, W), minval=-0.5, maxval=0.5)
    angle_true = jax.random.uniform(keys[5], (Nd, 1, H, W), minval=-0.5, maxval=0.5)
    mask = (jax.random.uniform(keys[6], (Nd, 1, H, W)) > 0.3).astype(jnp.float32)

    # Recognition inputs: T=16, N=2, C=12 (incl. blank=0), S=6
    T, N, C, S = 16, 2, 12, 6
    logits = jax.random.normal(keys[7], (T, N, C), dtype=jnp.float32)
    log_probs = jax.nn.log_softmax(logits, axis=-1)          # CTCLoss expects log-probs
    targets = jax.random.randint(keys[8], (N, S), 1, C, dtype=jnp.int32)
    input_lengths = jnp.array([16, 12], dtype=jnp.int32)
    target_lengths = jnp.array([6, 4], dtype=jnp.int32)

    out = fots_loss(score_pred, geo_pred, angle_pred,
                    score_true, geo_true, angle_true, mask,
                    log_probs, input_lengths, targets, target_lengths)
    jax.block_until_ready(out["fots_loss"])

    # ---- reference checks ----
    ref_cls, ref_reg, ref_det = detection_loss_ref(
        np.asarray(score_pred), np.asarray(geo_pred), np.asarray(angle_pred),
        np.asarray(score_true), np.asarray(geo_true), np.asarray(angle_true),
        np.asarray(mask))
    ref_recog = ctc_loss_ref(np.asarray(log_probs, dtype=np.float64), np.asarray(targets),
                             np.asarray(input_lengths), np.asarray(target_lengths))
    ref_fots = ref_det + LAMBDA_RECOG * ref_recog

    assert abs(float(out["cls_loss"]) - ref_cls) < 1e-2 * max(1.0, abs(ref_cls)), \
        (float(out["cls_loss"]), ref_cls)
    assert abs(float(out["reg_loss"]) - ref_reg) < 1e-2 * max(1.0, abs(ref_reg)), \
        (float(out["reg_loss"]), ref_reg)
    assert abs(float(out["recog_loss"]) - ref_recog) < 2e-2, \
        (float(out["recog_loss"]), ref_recog)
    assert abs(float(out["fots_loss"]) - ref_fots) < 5e-2 * max(1.0, abs(ref_fots)), \
        (float(out["fots_loss"]), ref_fots)

    print("KERNEL_OK")
</pallas_src>

<mosaic_0001>
module attributes {stable_mosaic.version = 11 : i64} {
  func.func @kernel(%arg0: i32, %arg1: i32, %arg2: memref<1x2x128xf32, #tpu.memory_space<vmem>>, %arg3: memref<1x2x128xf32, #tpu.memory_space<vmem>>, %arg4: memref<1x4x2x128xf32, #tpu.memory_space<vmem>>, %arg5: memref<1x4x2x128xf32, #tpu.memory_space<vmem>>, %arg6: memref<1x2x128xf32, #tpu.memory_space<vmem>>, %arg7: memref<1x2x128xf32, #tpu.memory_space<vmem>>, %arg8: memref<1x2x128xf32, #tpu.memory_space<vmem>>, %arg9: memref<1x8x128xf32, #tpu.memory_space<vmem>>, %arg10: memref<1x8x128xf32, #tpu.memory_space<vmem>>, %arg11: memref<1x8x128xf32, #tpu.memory_space<vmem>>) attributes {dimension_semantics = [#tpu.dimension_semantics<parallel>, #tpu.dimension_semantics<arbitrary>], iteration_bounds = array<i64: 2, 1>, scalar_prefetch = 0 : i64, scratch_operands = 0 : i64, tpu.core_type = #tpu.core_type<tc>, window_params = [{transform_indices = @transform_0, window_bounds = array<i64: 1, 2, 128>}, {transform_indices = @transform_1, window_bounds = array<i64: 1, 2, 128>}, {transform_indices = @transform_2, window_bounds = array<i64: 1, 4, 2, 128>}, {transform_indices = @transform_3, window_bounds = array<i64: 1, 4, 2, 128>}, {transform_indices = @transform_4, window_bounds = array<i64: 1, 2, 128>}, {transform_indices = @transform_5, window_bounds = array<i64: 1, 2, 128>}, {transform_indices = @transform_6, window_bounds = array<i64: 1, 2, 128>}, {transform_indices = @transform_7, window_bounds = array<i64: 1, 8, 128>}, {transform_indices = @transform_8, window_bounds = array<i64: 1, 8, 128>}, {transform_indices = @transform_9, window_bounds = array<i64: 1, 8, 128>}]} {
    %c0_i32 = arith.constant 0 : i32
    %0 = arith.cmpi eq, %arg1, %c0_i32 : i32
    %1 = arith.extui %0 : i1 to i32
    %c0_i32_0 = arith.constant 0 : i32
    %2 = arith.cmpi ne, %1, %c0_i32_0 : i32
    scf.if %2 {
      %cst_74 = arith.constant 0.000000e+00 : f32
      %100 = vector.broadcast %cst_74 : f32 to vector<1x8x128xf32>
      %c0_75 = arith.constant 0 : index
      %c0_76 = arith.constant 0 : index
      %c0_77 = arith.constant 0 : index
      %101 = vector.load %arg9[%c0_75, %c0_76, %c0_77] : memref<1x8x128xf32, #tpu.memory_space<vmem>>, vector<1x8x128xf32>
      tpu.vector_store %arg9[%c0_75, %c0_76, %c0_77], %100 {strides = array<i32>} : memref<1x8x128xf32, #tpu.memory_space<vmem>>, vector<1x8x128xf32>,
      %cst_78 = arith.constant 0.000000e+00 : f32
      %102 = vector.broadcast %cst_78 : f32 to vector<1x8x128xf32>
      %c0_79 = arith.constant 0 : index
      %c0_80 = arith.constant 0 : index
      %c0_81 = arith.constant 0 : index
      %103 = vector.load %arg10[%c0_79, %c0_80, %c0_81] : memref<1x8x128xf32, #tpu.memory_space<vmem>>, vector<1x8x128xf32>
      tpu.vector_store %arg10[%c0_79, %c0_80, %c0_81], %102 {strides = array<i32>} : memref<1x8x128xf32, #tpu.memory_space<vmem>>, vector<1x8x128xf32>,
      %cst_82 = arith.constant 0.000000e+00 : f32
      %104 = vector.broadcast %cst_82 : f32 to vector<1x8x128xf32>
      %c0_83 = arith.constant 0 : index
      %c0_84 = arith.constant 0 : index
      %c0_85 = arith.constant 0 : index
      %105 = vector.load %arg11[%c0_83, %c0_84, %c0_85] : memref<1x8x128xf32, #tpu.memory_space<vmem>>, vector<1x8x128xf32>
      tpu.vector_store %arg11[%c0_83, %c0_84, %c0_85], %104 {strides = array<i32>} : memref<1x8x128xf32, #tpu.memory_space<vmem>>, vector<1x8x128xf32>,
    } else {
    }
    %c0 = arith.constant 0 : index
    %c0_1 = arith.constant 0 : index
    %c0_2 = arith.constant 0 : index
    %3 = vector.load %arg2[%c0, %c0_1, %c0_2] : memref<1x2x128xf32, #tpu.memory_space<vmem>>, vector<1x2x128xf32>
    %4 = vector.shape_cast %3 : vector<1x2x128xf32> to vector<2x128xf32>
    %c0_3 = arith.constant 0 : index
    %c0_4 = arith.constant 0 : index
    %c0_5 = arith.constant 0 : index
    %5 = vector.load %arg3[%c0_3, %c0_4, %c0_5] : memref<1x2x128xf32, #tpu.memory_space<vmem>>, vector<1x2x128xf32>
    %6 = vector.shape_cast %5 : vector<1x2x128xf32> to vector<2x128xf32>
    %c0_6 = arith.constant 0 : index
    %c0_7 = arith.constant 0 : index
    %c0_8 = arith.constant 0 : index
    %7 = vector.load %arg8[%c0_6, %c0_7, %c0_8] : memref<1x2x128xf32, #tpu.memory_space<vmem>>, vector<1x2x128xf32>
    %8 = vector.shape_cast %7 : vector<1x2x128xf32> to vector<2x128xf32>
    %9 = math.log %4 : vector<2x128xf32>
    %cst = arith.constant -1.000000e+02 : f32
    %10 = vector.broadcast %cst : f32 to vector<2x128xf32>
    %11 = arith.maximumf %9, %10 : vector<2x128xf32>
    %cst_9 = arith.constant 1.000000e+00 : f32
    %12 = vector.broadcast %cst_9 : f32 to vector<2x128xf32>
    %13 = arith.subf %12, %4 : vector<2x128xf32>
    %14 = math.log %13 : vector<2x128xf32>
    %cst_10 = arith.constant -1.000000e+02 : f32
    %15 = vector.broadcast %cst_10 : f32 to vector<2x128xf32>
    %16 = arith.maximumf %14, %15 : vector<2x128xf32>
    %17 = arith.mulf %6, %11 : vector<2x128xf32>
    %cst_11 = arith.constant 1.000000e+00 : f32
    %18 = vector.broadcast %cst_11 : f32 to vector<2x128xf32>
    %19 = arith.subf %18, %6 : vector<2x128xf32>
    %20 = arith.mulf %19, %16 : vector<2x128xf32>
    %21 = arith.addf %17, %20 : vector<2x128xf32>
    %cst_12 = arith.constant 0.000000e+00 : f32
    %22 = vector.broadcast %cst_12 : f32 to vector<2x128xf32>
    %23 = arith.subf %22, %21 : vector<2x128xf32>
    %c0_13 = arith.constant 0 : index
    %c0_14 = arith.constant 0 : index
    %c0_15 = arith.constant 0 : index
    %c0_16 = arith.constant 0 : index
    %24 = vector.load %arg4[%c0_13, %c0_14, %c0_15, %c0_16] : memref<1x4x2x128xf32, #tpu.memory_space<vmem>>, vector<1x1x2x128xf32>
    %25 = vector.shape_cast %24 : vector<1x1x2x128xf32> to vector<2x128xf32>
    %c0_17 = arith.constant 0 : index
    %c1 = arith.constant 1 : index
    %c0_18 = arith.constant 0 : index
    %c0_19 = arith.constant 0 : index
    %26 = vector.load %arg4[%c0_17, %c1, %c0_18, %c0_19] : memref<1x4x2x128xf32, #tpu.memory_space<vmem>>, vector<1x1x2x128xf32>
    %27 = vector.shape_cast %26 : vector<1x1x2x128xf32> to vector<2x128xf32>
    %c0_20 = arith.constant 0 : index
    %c2 = arith.constant 2 : index
    %c0_21 = arith.constant 0 : index
    %c0_22 = arith.constant 0 : index
    %28 = vector.load %arg4[%c0_20, %c2, %c0_21, %c0_22] : memref<1x4x2x128xf32, #tpu.memory_space<vmem>>, vector<1x1x2x128xf32>
    %29 = vector.shape_cast %28 : vector<1x1x2x128xf32> to vector<2x128xf32>
    %c0_23 = arith.constant 0 : index
    %c3 = arith.constant 3 : index
    %c0_24 = arith.constant 0 : index
    %c0_25 = arith.constant 0 : index
    %30 = vector.load %arg4[%c0_23, %c3, %c0_24, %c0_25] : memref<1x4x2x128xf32, #tpu.memory_space<vmem>>, vector<1x1x2x128xf32>
    %31 = vector.shape_cast %30 : vector<1x1x2x128xf32> to vector<2x128xf32>
    %c0_26 = arith.constant 0 : index
    %c0_27 = arith.constant 0 : index
    %c0_28 = arith.constant 0 : index
    %c0_29 = arith.constant 0 : index
    %32 = vector.load %arg5[%c0_26, %c0_27, %c0_28, %c0_29] : memref<1x4x2x128xf32, #tpu.memory_space<vmem>>, vector<1x1x2x128xf32>
    %33 = vector.shape_cast %32 : vector<1x1x2x128xf32> to vector<2x128xf32>
    %c0_30 = arith.constant 0 : index
    %c1_31 = arith.constant 1 : index
    %c0_32 = arith.constant 0 : index
    %c0_33 = arith.constant 0 : index
    %34 = vector.load %arg5[%c0_30, %c1_31, %c0_32, %c0_33] : memref<1x4x2x128xf32, #tpu.memory_space<vmem>>, vector<1x1x2x128xf32>
    %35 = vector.shape_cast %34 : vector<1x1x2x128xf32> to vector<2x128xf32>
    %c0_34 = arith.constant 0 : index
    %c2_35 = arith.constant 2 : index
    %c0_36 = arith.constant 0 : index
    %c0_37 = arith.constant 0 : index
    %36 = vector.load %arg5[%c0_34, %c2_35, %c0_36, %c0_37] : memref<1x4x2x128xf32, #tpu.memory_space<vmem>>, vector<1x1x2x128xf32>
    %37 = vector.shape_cast %36 : vector<1x1x2x128xf32> to vector<2x128xf32>
    %c0_38 = arith.constant 0 : index
    %c3_39 = arith.constant 3 : index
    %c0_40 = arith.constant 0 : index
    %c0_41 = arith.constant 0 : index
    %38 = vector.load %arg5[%c0_38, %c3_39, %c0_40, %c0_41] : memref<1x4x2x128xf32, #tpu.memory_space<vmem>>, vector<1x1x2x128xf32>
    %39 = vector.shape_cast %38 : vector<1x1x2x128xf32> to vector<2x128xf32>
    %40 = arith.addf %33, %35 : vector<2x128xf32>
    %41 = arith.addf %37, %39 : vector<2x128xf32>
    %42 = arith.mulf %40, %41 : vector<2x128xf32>
    %43 = arith.addf %25, %27 : vector<2x128xf32>
    %44 = arith.addf %29, %31 : vector<2x128xf32>
    %45 = arith.mulf %43, %44 : vector<2x128xf32>
    %46 = arith.minimumf %33, %25 : vector<2x128xf32>
    %47 = arith.minimumf %35, %27 : vector<2x128xf32>
    %48 = arith.addf %46, %47 : vector<2x128xf32>
    %49 = arith.minimumf %37, %29 : vector<2x128xf32>
    %50 = arith.minimumf %39, %31 : vector<2x128xf32>
    %51 = arith.addf %49, %50 : vector<2x128xf32>
    %52 = arith.mulf %48, %51 : vector<2x128xf32>
    %53 = arith.addf %42, %45 : vector<2x128xf32>
    %54 = arith.subf %53, %52 : vector<2x128xf32>
    %cst_42 = arith.constant 1.000000e+00 : f32
    %55 = vector.broadcast %cst_42 : f32 to vector<2x128xf32>
    %56 = arith.addf %52, %55 : vector<2x128xf32>
    %cst_43 = arith.constant 1.000000e+00 : f32
    %57 = vector.broadcast %cst_43 : f32 to vector<2x128xf32>
    %58 = arith.addf %54, %57 : vector<2x128xf32>
    %59 = arith.divf %56, %58 : vector<2x128xf32>
    %60 = math.log %59 : vector<2x128xf32>
    %cst_44 = arith.constant 0.000000e+00 : f32
    %61 = vector.broadcast %cst_44 : f32 to vector<2x128xf32>
    %62 = arith.subf %61, %60 : vector<2x128xf32>
    %c0_45 = arith.constant 0 : index
    %c0_46 = arith.constant 0 : index
    %c0_47 = arith.constant 0 : index
    %63 = vector.load %arg6[%c0_45, %c0_46, %c0_47] : memref<1x2x128xf32, #tpu.memory_space<vmem>>, vector<1x2x128xf32>
    %64 = vector.shape_cast %63 : vector<1x2x128xf32> to vector<2x128xf32>
    %c0_48 = arith.constant 0 : index
    %c0_49 = arith.constant 0 : index
    %c0_50 = arith.constant 0 : index
    %65 = vector.load %arg7[%c0_48, %c0_49, %c0_50] : memref<1x2x128xf32, #tpu.memory_space<vmem>>, vector<1x2x128xf32>
    %66 = vector.shape_cast %65 : vector<1x2x128xf32> to vector<2x128xf32>
    %67 = arith.subf %64, %66 : vector<2x128xf32>
    %68 = math.cos %67 : vector<2x128xf32>
    %cst_51 = arith.constant 1.000000e+00 : f32
    %69 = vector.broadcast %cst_51 : f32 to vector<2x128xf32>
    %70 = arith.subf %69, %68 : vector<2x128xf32>
    %cst_52 = arith.constant 1.000000e+01 : f32
    %71 = vector.broadcast %cst_52 : f32 to vector<2x128xf32>
    %72 = arith.mulf %71, %70 : vector<2x128xf32>
    %73 = arith.addf %62, %72 : vector<2x128xf32>
    %74 = arith.mulf %23, %8 : vector<2x128xf32>
    %c0_53 = arith.constant 0 : index
    %c0_54 = arith.constant 0 : index
    %c0_55 = arith.constant 0 : index
    %75 = vector.load %arg9[%c0_53, %c0_54, %c0_55] : memref<1x8x128xf32, #tpu.memory_space<vmem>>, vector<1x1x128xf32>
    %76 = vector.shape_cast %75 : vector<1x1x128xf32> to vector<1x128xf32>
    %cst_56 = arith.constant dense<0.000000e+00> : vector<128xf32>
    %77 = vector.multi_reduction <add>, %74, %cst_56 [0] : vector<2x128xf32> to vector<128xf32>
    %78 = vector.shape_cast %77 : vector<128xf32> to vector<1x128xf32>
    %79 = arith.addf %76, %78 : vector<1x128xf32>
    %c0_57 = arith.constant 0 : index
    %c0_58 = arith.constant 0 : index
    %c0_59 = arith.constant 0 : index
    %80 = vector.load %arg9[%c0_57, %c0_58, %c0_59] : memref<1x8x128xf32, #tpu.memory_space<vmem>>, vector<1x1x128xf32>
    %81 = vector.shape_cast %80 : vector<1x1x128xf32> to vector<1x128xf32>
    %82 = vector.shape_cast %79 : vector<1x128xf32> to vector<1x1x128xf32>
    tpu.vector_store %arg9[%c0_57, %c0_58, %c0_59], %82 {strides = array<i32>} : memref<1x8x128xf32, #tpu.memory_space<vmem>>, vector<1x1x128xf32>,
    %83 = arith.mulf %73, %8 : vector<2x128xf32>
    %c0_60 = arith.constant 0 : index
    %c0_61 = arith.constant 0 : index
    %c0_62 = arith.constant 0 : index
    %84 = vector.load %arg10[%c0_60, %c0_61, %c0_62] : memref<1x8x128xf32, #tpu.memory_space<vmem>>, vector<1x1x128xf32>
    %85 = vector.shape_cast %84 : vector<1x1x128xf32> to vector<1x128xf32>
    %cst_63 = arith.constant dense<0.000000e+00> : vector<128xf32>
    %86 = vector.multi_reduction <add>, %83, %cst_63 [0] : vector<2x128xf32> to vector<128xf32>
    %87 = vector.shape_cast %86 : vector<128xf32> to vector<1x128xf32>
    %88 = arith.addf %85, %87 : vector<1x128xf32>
    %c0_64 = arith.constant 0 : index
    %c0_65 = arith.constant 0 : index
    %c0_66 = arith.constant 0 : index
    %89 = vector.load %arg10[%c0_64, %c0_65, %c0_66] : memref<1x8x128xf32, #tpu.memory_space<vmem>>, vector<1x1x128xf32>
    %90 = vector.shape_cast %89 : vector<1x1x128xf32> to vector<1x128xf32>
    %91 = vector.shape_cast %88 : vector<1x128xf32> to vector<1x1x128xf32>
    tpu.vector_store %arg10[%c0_64, %c0_65, %c0_66], %91 {strides = array<i32>} : memref<1x8x128xf32, #tpu.memory_space<vmem>>, vector<1x1x128xf32>,
    %c0_67 = arith.constant 0 : index
    %c0_68 = arith.constant 0 : index
    %c0_69 = arith.constant 0 : index
    %92 = vector.load %arg11[%c0_67, %c0_68, %c0_69] : memref<1x8x128xf32, #tpu.memory_space<vmem>>, vector<1x1x128xf32>
    %93 = vector.shape_cast %92 : vector<1x1x128xf32> to vector<1x128xf32>
    %cst_70 = arith.constant dense<0.000000e+00> : vector<128xf32>
    %94 = vector.multi_reduction <add>, %8, %cst_70 [0] : vector<2x128xf32> to vector<128xf32>
    %95 = vector.shape_cast %94 : vector<128xf32> to vector<1x128xf32>
    %96 = arith.addf %93, %95 : vector<1x128xf32>
    %c0_71 = arith.constant 0 : index
    %c0_72 = arith.constant 0 : index
    %c0_73 = arith.constant 0 : index
    %97 = vector.load %arg11[%c0_71, %c0_72, %c0_73] : memref<1x8x128xf32, #tpu.memory_space<vmem>>, vector<1x1x128xf32>
    %98 = vector.shape_cast %97 : vector<1x1x128xf32> to vector<1x128xf32>
    %99 = vector.shape_cast %96 : vector<1x128xf32> to vector<1x1x128xf32>
    tpu.vector_store %arg11[%c0_71, %c0_72, %c0_73], %99 {strides = array<i32>} : memref<1x8x128xf32, #tpu.memory_space<vmem>>, vector<1x1x128xf32>,
    return
  }
  func.func @transform_0(%arg0: i32, %arg1: i32) -> (i32, i32, i32) {
    %c0_i32 = arith.constant 0 : i32
    %c0_i32_0 = arith.constant 0 : i32
    return %arg0, %arg1, %c0_i32 : i32, i32, i32
  }
  func.func @transform_1(%arg0: i32, %arg1: i32) -> (i32, i32, i32) {
    %c0_i32 = arith.constant 0 : i32
    %c0_i32_0 = arith.constant 0 : i32
    return %arg0, %arg1, %c0_i32 : i32, i32, i32
  }
  func.func @transform_2(%arg0: i32, %arg1: i32) -> (i32, i32, i32, i32) {
    %c0_i32 = arith.constant 0 : i32
    %c0_i32_0 = arith.constant 0 : i32
    %c0_i32_1 = arith.constant 0 : i32
    return %arg0, %c0_i32, %arg1, %c0_i32_0 : i32, i32, i32, i32
  }
  func.func @transform_3(%arg0: i32, %arg1: i32) -> (i32, i32, i32, i32) {
    %c0_i32 = arith.constant 0 : i32
    %c0_i32_0 = arith.constant 0 : i32
    %c0_i32_1 = arith.constant 0 : i32
    return %arg0, %c0_i32, %arg1, %c0_i32_0 : i32, i32, i32, i32
  }
  func.func @transform_4(%arg0: i32, %arg1: i32) -> (i32, i32, i32) {
    %c0_i32 = arith.constant 0 : i32
    %c0_i32_0 = arith.constant 0 : i32
    return %arg0, %arg1, %c0_i32 : i32, i32, i32
  }
  func.func @transform_5(%arg0: i32, %arg1: i32) -> (i32, i32, i32) {
    %c0_i32 = arith.constant 0 : i32
    %c0_i32_0 = arith.constant 0 : i32
    return %arg0, %arg1, %c0_i32 : i32, i32, i32
  }
  func.func @transform_6(%arg0: i32, %arg1: i32) -> (i32, i32, i32) {
    %c0_i32 = arith.constant 0 : i32
    %c0_i32_0 = arith.constant 0 : i32
    return %arg0, %arg1, %c0_i32 : i32, i32, i32
  }
  func.func @transform_7(%arg0: i32, %arg1: i32) -> (i32, i32, i32) {
    %c0_i32 = arith.constant 0 : i32
    %c0_i32_0 = arith.constant 0 : i32
    %c0_i32_1 = arith.constant 0 : i32
    return %arg0, %c0_i32, %c0_i32_0 : i32, i32, i32
  }
  func.func @transform_8(%arg0: i32, %arg1: i32) -> (i32, i32, i32) {
    %c0_i32 = arith.constant 0 : i32
    %c0_i32_0 = arith.constant 0 : i32
    %c0_i32_1 = arith.constant 0 : i32
    return %arg0, %c0_i32, %c0_i32_0 : i32, i32, i32
  }
  func.func @transform_9(%arg0: i32, %arg1: i32) -> (i32, i32, i32) {
    %c0_i32 = arith.constant 0 : i32
    %c0_i32_0 = arith.constant 0 : i32
    %c0_i32_1 = arith.constant 0 : i32
    return %arg0, %c0_i32, %c0_i32_0 : i32, i32, i32
  }
}

</mosaic_0001>

<llo_original>
// kernel: tpu_custom_call.1
$region0: #{tpu_custom_call.1}
  #allocation0 [shape = 'u32[]', space=smem, size = 0x4, offset = 0x4, fixed_abs, tag = 'smem constant byte address 0x4 - core index']
  #allocation1 [shape = 'u32[72,128]{1,0:T(1,128)}', space=vmem, size = 0x9000, scoped, tag = 'internal scratch']
  %s0 = inlined_call_operand.hbm [shape: f32[2,2,128], index: 0, kind: input, shape index: {}]
  %s1 = inlined_call_operand.hbm [shape: f32[2,2,128], index: 1, kind: input, shape index: {}]
  %s2 = inlined_call_operand.hbm [shape: f32[2,4,2,128], index: 2, kind: input, shape index: {}]
  %s3 = inlined_call_operand.hbm [shape: f32[2,4,2,128], index: 3, kind: input, shape index: {}]
  %s4 = inlined_call_operand.hbm [shape: f32[2,2,128], index: 4, kind: input, shape index: {}]
  %s5 = inlined_call_operand.vmem [shape: f32[2,2,128], index: 5, kind: input, shape index: {}]
  %s6 = inlined_call_operand.hbm [shape: f32[2,2,128], index: 6, kind: input, shape index: {}]
  %s7 = inlined_call_operand.hbm [shape: f32[2,8,128], index: 7, kind: output, shape index: {0}]
  %s8 = inlined_call_operand.hbm [shape: f32[2,8,128], index: 8, kind: output, shape index: {1}]
  %s9 = inlined_call_operand.hbm [shape: f32[2,8,128], index: 9, kind: output, shape index: {2}]
  %10 = xla_tuple %s7, %s8, %s9
  %s11 = sld [smem:[#allocation0]]
  $region105: #{tpu_custom_call.1} parent=0
    _
  %s13 = ssub.s32 1, %s11
  %s14 = scalar_select 0, %s13, %s11
  $region1: #{tpu_custom_call.1} parent=0
    #allocation2 [shape = 'u8[2048]{0}', space=vmem, size = 0x800, scoped, tag = 'input window, operand 0']
    #allocation3 [shape = 's32[2]{0}', space=sflag, size = 0x8, scoped, tag = 'scoped memory for tpu_custom_call.1']
    #allocation4 [shape = 's32[2]{0}', space=sflag, size = 0x8, scoped, tag = 'scoped memory for tpu_custom_call.1']
    #allocation5 [shape = 'u8[2048]{0}', space=vmem, size = 0x800, scoped, tag = 'input window, operand 1']
    #allocation6 [shape = 's32[2]{0}', space=sflag, size = 0x8, scoped, tag = 'scoped memory for tpu_custom_call.1']
    #allocation7 [shape = 'u8[8192]{0}', space=vmem, size = 0x2000, scoped, tag = 'input window, operand 2']
    #allocation8 [shape = 'u8[8192]{0}', space=vmem, size = 0x2000, scoped, tag = 'input window, operand 3']
    #allocation9 [shape = 's32[2]{0}', space=sflag, size = 0x8, scoped, tag = 'scoped memory for tpu_custom_call.1']
    #allocation10 [shape = 'u8[2048]{0}', space=vmem, size = 0x800, scoped, tag = 'input window, operand 4']
    #allocation11 [shape = 'u8[2048]{0}', space=vmem, size = 0x800, scoped, tag = 'input window, operand 6']
    #allocation12 [shape = 's32[2]{0}', space=sflag, size = 0x8, scoped, tag = 'scoped memory for tpu_custom_call.1']
    #allocation13 [shape = 'u8[8192]{0}', space=vmem, size = 0x2000, scoped, tag = 'output window, operand 0']
    #allocation14 [shape = 'u8[8192]{0}', space=vmem, size = 0x2000, scoped, tag = 'output window, operand 1']
    #allocation15 [shape = 's32[2]{0}', space=sflag, size = 0x8, scoped, tag = 'scoped memory for tpu_custom_call.1']
    #allocation16 [shape = 'u8[8192]{0}', space=vmem, size = 0x2000, scoped, tag = 'output window, operand 2']
    %15 = vsyncpa [#allocation3], 0
    %s16 = scalar_lea.sflag [#allocation3], 1
    %17 = vsyncpa %s16, 0
    %18 = vsyncpa [#allocation6], 0
    %s19 = scalar_lea.sflag [#allocation6], 1
    %20 = vsyncpa %s19, 0
    %21 = vsyncpa [#allocation9], 0
    %s22 = scalar_lea.sflag [#allocation9], 1
    %23 = vsyncpa %s22, 0
    %24 = vsyncpa [#allocation12], 0
    %s25 = scalar_lea.sflag [#allocation12], 1
    %26 = vsyncpa %s25, 0
    %27 = vsyncpa [#allocation4], 0
    %s28 = scalar_lea.sflag [#allocation4], 1
    %29 = vsyncpa %s28, 0
    %30 = vsyncpa [#allocation15], 0
    %s31 = scalar_lea.sflag [#allocation15], 1
    %32 = vsyncpa %s31, 0
    loop: start=0, step=1, limit=4
    $region2: #{tpu_custom_call.1} parent=1 // loop_pre_header
      _
    $region3: #{tpu_custom_call.1} parent=1 // loop_header
      %s34 = sphi 0, %s38
      %p35 = scmp.ge.s32.totalorder %s34, 4
      %s41 = sphi 0, %s53
      %s42 = sphi 0, %s49
      %s43 = sphi 0, %s41
      %s44 = sphi 0, %s42
      %s45 = sphi 0, %s43
      %s46 = sphi 0, %s44
      %s58 = sphi 0, %s60
      %s61 = sphi 0, %s58
      %s62 = sphi 0, %s61
      %s78 = sphi 0, %s62
      %s86 = sphi 0, %s88
      %s89 = sphi 0, %s86
      %s90 = sphi 0, %s89
      %s106 = sphi 0, %s90
      %s114 = sphi 0, %s116
      %s117 = sphi 0, %s114
      %s118 = sphi 0, %s117
      %s134 = sphi 0, %s118
      %s142 = sphi 0, %s144
      %s145 = sphi 0, %s142
      %s146 = sphi 0, %s145
      %s162 = sphi 0, %s146
      %s170 = sphi 0, %s172
      %s173 = sphi 0, %s170
      %s174 = sphi 0, %s173
      %s190 = sphi 0, %s174
      %s198 = sphi 0, %s200
      %s201 = sphi 0, %s198
      %s202 = sphi 0, %s201
      %s218 = sphi 0, %s202
      %s226 = sphi 0, %s228
      %s229 = sphi 0, %s226
      %s230 = sphi 0, %s229
      %s246 = sphi 0, %s230
      %s252 = sphi 0, %s254
      %s255 = sphi 0, %s252
      %s256 = sphi 0, %s255
      %s272 = sphi 0, %s256
      %s278 = sphi 0, %s280
      %s281 = sphi 0, %s278
      %s282 = sphi 0, %s281
      %s298 = sphi 0, %s282
      %s304 = sphi 0, %s306
      %s307 = sphi 0, %s304
      %s308 = sphi 0, %s307
      %s324 = sphi 0, %s308
    $region4: #{tpu_custom_call.1} parent=1 // loop_header_branch
      %37 = sbr.rel (%p35) target = $region8
    $region5: #{tpu_custom_call.1} parent=1 // loop_body
      %s39 = ssub.s32 %s34, 1
      %s40 = ssub.s32 %s34, 2
      %s47 = sadd.s32 1, %s42
      %p48 = scmp.ge.s32.totalorder %s47, 1
      %s49 = scalar_select %p48, 0, %s47
      %s50 = sadd.s32 1, %s41
      %s51 = scalar_select %p48, %s50, %s41
      %p52 = scmp.ge.s32.totalorder %s51, 2
      %s53 = scalar_select %p52, 0, %s51
      %s54 = ssub.s32 %s41, %s53
      %s55 = ssub.s32 %s42, %s49
      %s56 = sor.u32 %s54, %s55
      %p57 = scmp.eq.s32.totalorder %s56, 0
      %s59 = sadd.s32 %s58, 1
      %s60 = scalar_select %p57, %s58, %s59
      %p63 = pneg %p57
      %p64 = scmp.eq.s32.totalorder %s34, 1
      %p65 = por %p63, %p64
      %p66 = scmp.ne.s32.totalorder %s58, %s61
      %p67 = scmp.eq.s32.totalorder %s34, 0
      %p68 = por %p66, %p67
      %p69 = scmp.ne.s32.totalorder %s58, %s61
      %p70 = scmp.eq.s32.totalorder %s39, 1
      %p71 = por %p69, %p70
      %p72 = scmp.ne.s32.totalorder %s61, %s62
      %p73 = scmp.eq.s32.totalorder %s39, 0
      %p74 = por %p72, %p73
      %p75 = scmp.ne.s32.totalorder %s61, %s62
      %p76 = scmp.eq.s32.totalorder %s40, 1
      %p77 = por %p75, %p76
      %p79 = scmp.ne.s32.totalorder %s62, %s78
      %p80 = scmp.eq.s32.totalorder %s40, 0
      %p81 = por %p79, %p80
      %s82 = ssub.s32 %s41, %s53
      %s83 = ssub.s32 %s42, %s49
      %s84 = sor.u32 %s82, %s83
      %p85 = scmp.eq.s32.totalorder %s84, 0
      %s87 = sadd.s32 %s86, 1
      %s88 = scalar_select %p85, %s86, %s87
      %p91 = pneg %p85
      %p92 = scmp.eq.s32.totalorder %s34, 1
      %p93 = por %p91, %p92
      %p94 = scmp.ne.s32.totalorder %s86, %s89
      %p95 = scmp.eq.s32.totalorder %s34, 0
      %p96 = por %p94, %p95
      %p97 = scmp.ne.s32.totalorder %s86, %s89
      %p98 = scmp.eq.s32.totalorder %s39, 1
      %p99 = por %p97, %p98
      %p100 = scmp.ne.s32.totalorder %s89, %s90
      %p101 = scmp.eq.s32.totalorder %s39, 0
      %p102 = por %p100, %p101
      %p103 = scmp.ne.s32.totalorder %s89, %s90
      %p104 = scmp.eq.s32.totalorder %s40, 1
      %p105 = por %p103, %p104
      %p107 = scmp.ne.s32.totalorder %s90, %s106
      %p108 = scmp.eq.s32.totalorder %s40, 0
      %p109 = por %p107, %p108
      %s110 = ssub.s32 %s41, %s53
      %s111 = ssub.s32 %s42, %s49
      %s112 = sor.u32 %s110, %s111
      %p113 = scmp.eq.s32.totalorder %s112, 0
      %s115 = sadd.s32 %s114, 1
      %s116 = scalar_select %p113, %s114, %s115
      %p119 = pneg %p113
      %p120 = scmp.eq.s32.totalorder %s34, 1
      %p121 = por %p119, %p120
      %p122 = scmp.ne.s32.totalorder %s114, %s117
      %p123 = scmp.eq.s32.totalorder %s34, 0
      %p124 = por %p122, %p123
      %p125 = scmp.ne.s32.totalorder %s114, %s117
      %p126 = scmp.eq.s32.totalorder %s39, 1
      %p127 = por %p125, %p126
      %p128 = scmp.ne.s32.totalorder %s117, %s118
      %p129 = scmp.eq.s32.totalorder %s39, 0
      %p130 = por %p128, %p129
      %p131 = scmp.ne.s32.totalorder %s117, %s118
      %p132 = scmp.eq.s32.totalorder %s40, 1
      %p133 = por %p131, %p132
      %p135 = scmp.ne.s32.totalorder %s118, %s134
      %p136 = scmp.eq.s32.totalorder %s40, 0
      %p137 = por %p135, %p136
      %s138 = ssub.s32 %s41, %s53
      %s139 = ssub.s32 %s42, %s49
      %s140 = sor.u32 %s138, %s139
      %p141 = scmp.eq.s32.totalorder %s140, 0
      %s143 = sadd.s32 %s142, 1
      %s144 = scalar_select %p141, %s142, %s143
      %p147 = pneg %p141
      %p148 = scmp.eq.s32.totalorder %s34, 1
      %p149 = por %p147, %p148
      %p150 = scmp.ne.s32.totalorder %s142, %s145
      %p151 = scmp.eq.s32.totalorder %s34, 0
      %p152 = por %p150, %p151
      %p153 = scmp.ne.s32.totalorder %s142, %s145
      %p154 = scmp.eq.s32.totalorder %s39, 1
      %p155 = por %p153, %p154
      %p156 = scmp.ne.s32.totalorder %s145, %s146
      %p157 = scmp.eq.s32.totalorder %s39, 0
      %p158 = por %p156, %p157
      %p159 = scmp.ne.s32.totalorder %s145, %s146
      %p160 = scmp.eq.s32.totalorder %s40, 1
      %p161 = por %p159, %p160
      %p163 = scmp.ne.s32.totalorder %s146, %s162
      %p164 = scmp.eq.s32.totalorder %s40, 0
      %p165 = por %p163, %p164
      %s166 = ssub.s32 %s41, %s53
      %s167 = ssub.s32 %s42, %s49
      %s168 = sor.u32 %s166, %s167
      %p169 = scmp.eq.s32.totalorder %s168, 0
      %s171 = sadd.s32 %s170, 1
      %s172 = scalar_select %p169, %s170, %s171
      %p175 = pneg %p169
      %p176 = scmp.eq.s32.totalorder %s34, 1
      %p177 = por %p175, %p176
      %p178 = scmp.ne.s32.totalorder %s170, %s173
      %p179 = scmp.eq.s32.totalorder %s34, 0
      %p180 = por %p178, %p179
      %p181 = scmp.ne.s32.totalorder %s170, %s173
      %p182 = scmp.eq.s32.totalorder %s39, 1
      %p183 = por %p181, %p182
      %p184 = scmp.ne.s32.totalorder %s173, %s174
      %p185 = scmp.eq.s32.totalorder %s39, 0
      %p186 = por %p184, %p185
      %p187 = scmp.ne.s32.totalorder %s173, %s174
      %p188 = scmp.eq.s32.totalorder %s40, 1
      %p189 = por %p187, %p188
      %p191 = scmp.ne.s32.totalorder %s174, %s190
      %p192 = scmp.eq.s32.totalorder %s40, 0
      %p193 = por %p191, %p192
      %s194 = ssub.s32 %s41, %s53
      %s195 = ssub.s32 %s42, %s49
      %s196 = sor.u32 %s194, %s195
      %p197 = scmp.eq.s32.totalorder %s196, 0
      %s199 = sadd.s32 %s198, 1
      %s200 = scalar_select %p197, %s198, %s199
      %p203 = pneg %p197
      %p204 = scmp.eq.s32.totalorder %s34, 1
      %p205 = por %p203, %p204
      %p206 = scmp.ne.s32.totalorder %s198, %s201
      %p207 = scmp.eq.s32.totalorder %s34, 0
      %p208 = por %p206, %p207
      %p209 = scmp.ne.s32.totalorder %s198, %s201
      %p210 = scmp.eq.s32.totalorder %s39, 1
      %p211 = por %p209, %p210
      %p212 = scmp.ne.s32.totalorder %s201, %s202
      %p213 = scmp.eq.s32.totalorder %s39, 0
      %p214 = por %p212, %p213
      %p215 = scmp.ne.s32.totalorder %s201, %s202
      %p216 = scmp.eq.s32.totalorder %s40, 1
      %p217 = por %p215, %p216
      %p219 = scmp.ne.s32.totalorder %s202, %s218
      %p220 = scmp.eq.s32.totalorder %s40, 0
      %p221 = por %p219, %p220
      %s222 = ssub.s32 %s41, %s53
      %s223 = ssub.s32 %s42, %s49
      %s224 = sor.u32 %s222, %s223
      %p225 = scmp.eq.s32.totalorder %s224, 0
      %s227 = sadd.s32 %s226, 1
      %s228 = scalar_select %p225, %s226, %s227
      %p231 = pneg %p225
      %p232 = scmp.eq.s32.totalorder %s34, 1
      %p233 = por %p231, %p232
      %p234 = scmp.ne.s32.totalorder %s226, %s229
      %p235 = scmp.eq.s32.totalorder %s34, 0
      %p236 = por %p234, %p235
      %p237 = scmp.ne.s32.totalorder %s226, %s229
      %p238 = scmp.eq.s32.totalorder %s39, 1
      %p239 = por %p237, %p238
      %p240 = scmp.ne.s32.totalorder %s229, %s230
      %p241 = scmp.eq.s32.totalorder %s39, 0
      %p242 = por %p240, %p241
      %p243 = scmp.ne.s32.totalorder %s229, %s230
      %p244 = scmp.eq.s32.totalorder %s40, 1
      %p245 = por %p243, %p244
      %p247 = scmp.ne.s32.totalorder %s230, %s246
      %p248 = scmp.eq.s32.totalorder %s40, 0
      %p249 = por %p247, %p248
      %s250 = ssub.s32 %s41, %s53
      %p251 = scmp.eq.s32.totalorder %s250, 0
      %s253 = sadd.s32 %s252, 1
      %s254 = scalar_select %p251, %s252, %s253
      %p257 = pneg %p251
      %p258 = scmp.eq.s32.totalorder %s34, 1
      %p259 = por %p257, %p258
      %p260 = scmp.ne.s32.totalorder %s252, %s255
      %p261 = scmp.eq.s32.totalorder %s34, 0
      %p262 = por %p260, %p261
      %p263 = scmp.ne.s32.totalorder %s252, %s255
      %p264 = scmp.eq.s32.totalorder %s39, 1
      %p265 = por %p263, %p264
      %p266 = scmp.ne.s32.totalorder %s255, %s256
      %p267 = scmp.eq.s32.totalorder %s39, 0
      %p268 = por %p266, %p267
      %p269 = scmp.ne.s32.totalorder %s255, %s256
      %p270 = scmp.eq.s32.totalorder %s40, 1
      %p271 = por %p269, %p270
      %p273 = scmp.ne.s32.totalorder %s256, %s272
      %p274 = scmp.eq.s32.totalorder %s40, 0
      %p275 = por %p273, %p274
      %s276 = ssub.s32 %s41, %s53
      %p277 = scmp.eq.s32.totalorder %s276, 0
      %s279 = sadd.s32 %s278, 1
      %s280 = scalar_select %p277, %s278, %s279
      %p283 = pneg %p277
      %p284 = scmp.eq.s32.totalorder %s34, 1
      %p285 = por %p283, %p284
      %p286 = scmp.ne.s32.totalorder %s278, %s281
      %p287 = scmp.eq.s32.totalorder %s34, 0
      %p288 = por %p286, %p287
      %p289 = scmp.ne.s32.totalorder %s278, %s281
      %p290 = scmp.eq.s32.totalorder %s39, 1
      %p291 = por %p289, %p290
      %p292 = scmp.ne.s32.totalorder %s281, %s282
      %p293 = scmp.eq.s32.totalorder %s39, 0
      %p294 = por %p292, %p293
      %p295 = scmp.ne.s32.totalorder %s281, %s282
      %p296 = scmp.eq.s32.totalorder %s40, 1
      %p297 = por %p295, %p296
      %p299 = scmp.ne.s32.totalorder %s282, %s298
      %p300 = scmp.eq.s32.totalorder %s40, 0
      %p301 = por %p299, %p300
      %s302 = ssub.s32 %s41, %s53
      %p303 = scmp.eq.s32.totalorder %s302, 0
      %s305 = sadd.s32 %s304, 1
      %s306 = scalar_select %p303, %s304, %s305
      %p309 = pneg %p303
      %p310 = scmp.eq.s32.totalorder %s34, 1
      %p311 = por %p309, %p310
      %p312 = scmp.ne.s32.totalorder %s304, %s307
      %p313 = scmp.eq.s32.totalorder %s34, 0
      %p314 = por %p312, %p313
      %p315 = scmp.ne.s32.totalorder %s304, %s307
      %p316 = scmp.eq.s32.totalorder %s39, 1
      %p317 = por %p315, %p316
      %p318 = scmp.ne.s32.totalorder %s307, %s308
      %p319 = scmp.eq.s32.totalorder %s39, 0
      %p320 = por %p318, %p319
      %p321 = scmp.ne.s32.totalorder %s307, %s308
      %p322 = scmp.eq.s32.totalorder %s40, 1
      %p323 = por %p321, %p322
      %p325 = scmp.ne.s32.totalorder %s308, %s324
      %p326 = scmp.eq.s32.totalorder %s40, 0
      %p327 = por %p325, %p326
      %p328 = scmp.le.s32.totalorder 1, %s34
      %p329 = scmp.lt.s32.totalorder %s34, 3
      %p330 = pnand %p328, %p329
      %p331 = pneg %p330
      // Predicated region
      $region9: #{tpu_custom_call.1} parent=5 // pred_check
        _
      $region10: #{tpu_custom_call.1} parent=5 // pred_check_branch
        %333 = sbr.rel (%p330) target = $region12
      $region11: #{tpu_custom_call.1} parent=5 // pred_region
        %s334 = ssub.s32 %s34, 1
      $region12: #{tpu_custom_call.1} parent=5 // pred_fallthru
        _
      %p335 = scmp.lt.s32.totalorder %s34, 2
      // Predicated region
      $region13: #{tpu_custom_call.1} parent=5 // pred_check
        %p336 = pneg %p335
      $region14: #{tpu_custom_call.1} parent=5 // pred_check_branch
        %338 = sbr.rel (%p336) target = $region16
      $region15: #{tpu_custom_call.1} parent=5 // pred_region
        // Predicated region
        $region17: #{tpu_custom_call.1} parent=15 // pred_check
          %p339 = pneg %p68
        $region18: #{tpu_custom_call.1} parent=15 // pred_check_branch
          %341 = sbr.rel (%p339) target = $region20
        $region19: #{tpu_custom_call.1} parent=15 // pred_region
          %s342 = sand.u32 %s58, 1
          %s343 = scalar_lea.sflag [#allocation3], %s342
          %s344 = sand.u32 %s58, 1
          %s345 = smul.addr %s344, 2
          %s346 = scalar_lea.vmem [#allocation2], %s345
          %348 = vsyncadd %s343, 0
          %s349 = sadd.s32 %s42, %s41
          %s350 = smul.addr %s349, 2
          %s351 = scalar_lea.hbm %s0, %s350
          %s353 = sshll.u32 %s351, 4
          %s354 = int_to_ptr.hbm [resolvable:$true] %s353
          %s355 = sshll.u32 %s346, 4
          %s356 = int_to_ptr.vmem [resolvable:$true] %s355
          %358 = dma.hbm_to_vmem [thread:$0]  %s354, 32, %s356, %s343
        $region20: #{tpu_custom_call.1} parent=15 // pred_fallthru
          _
        // Predicated region
        $region21: #{tpu_custom_call.1} parent=15 // pred_check
          %p359 = pneg %p96
        $region22: #{tpu_custom_call.1} parent=15 // pred_check_branch
          %361 = sbr.rel (%p359) target = $region24
        $region23: #{tpu_custom_call.1} parent=15 // pred_region
          %s362 = sand.u32 %s34, 1
          %s363 = scalar_lea.sflag [#allocation6], %s362
          %s364 = sand.u32 %s86, 1
          %s365 = smul.addr %s364, 2
          %s366 = scalar_lea.vmem [#allocation5], %s365
          %368 = vsyncadd %s363, 0
          %s369 = sadd.s32 %s42, %s41
          %s370 = smul.addr %s369, 2
          %s371 = scalar_lea.hbm %s1, %s370
          %s373 = sshll.u32 %s371, 4
          %s374 = int_to_ptr.hbm [resolvable:$true] %s373
          %s375 = sshll.u32 %s366, 4
          %s376 = int_to_ptr.vmem [resolvable:$true] %s375
          %378 = dma.hbm_to_vmem [thread:$0]  %s374, 32, %s376, %s363
        $region24: #{tpu_custom_call.1} parent=15 // pred_fallthru
          _
        // Predicated region
        $region25: #{tpu_custom_call.1} parent=15 // pred_check
          %p379 = pneg %p124
        $region26: #{tpu_custom_call.1} parent=15 // pred_check_branch
          %381 = sbr.rel (%p379) target = $region28
        $region27: #{tpu_custom_call.1} parent=15 // pred_region
          %s382 = sand.u32 %s34, 1
          %s383 = scalar_lea.sflag [#allocation6], %s382
          %s384 = sand.u32 %s114, 1
          %s385 = smul.addr %s384, 8
          %s386 = scalar_lea.vmem [#allocation7], %s385
          %388 = vsyncadd %s383, 0
          %s389 = smul.addr %s41, 4
          %s390 = sadd.s32 %s42, %s389
          %s391 = smul.addr %s390, 2
          %s392 = scalar_lea.hbm %s2, %s391
          %s393 = sshll.u32 %s392, 4
          %s394 = int_to_ptr.hbm [resolvable:$true] %s393
          %s395 = sshll.u32 %s386, 4
          %s396 = int_to_ptr.vmem [resolvable:$true] %s395
          %401 = dma.hbm_to_vmem [thread:$0]  %s394, 128, %s396, %s383, 32, 32, 2
        $region28: #{tpu_custom_call.1} parent=15 // pred_fallthru
          _
        // Predicated region
        $region29: #{tpu_custom_call.1} parent=15 // pred_check
          %p402 = pneg %p152
        $region30: #{tpu_custom_call.1} parent=15 // pred_check_branch
          %404 = sbr.rel (%p402) target = $region32
        $region31: #{tpu_custom_call.1} parent=15 // pred_region
          %s405 = sand.u32 %s34, 1
          %s406 = scalar_lea.sflag [#allocation9], %s405
          %s407 = sand.u32 %s142, 1
          %s408 = smul.addr %s407, 8
          %s409 = scalar_lea.vmem [#allocation8], %s408
          %411 = vsyncadd %s406, 0
          %s412 = smul.addr %s41, 4
          %s413 = sadd.s32 %s42, %s412
          %s414 = smul.addr %s413, 2
          %s415 = scalar_lea.hbm %s3, %s414
          %s416 = sshll.u32 %s415, 4
          %s417 = int_to_ptr.hbm [resolvable:$true] %s416
          %s418 = sshll.u32 %s409, 4
          %s419 = int_to_ptr.vmem [resolvable:$true] %s418
          %424 = dma.hbm_to_vmem [thread:$0]  %s417, 128, %s419, %s406, 32, 32, 2
        $region32: #{tpu_custom_call.1} parent=15 // pred_fallthru
          _
        // Predicated region
        $region33: #{tpu_custom_call.1} parent=15 // pred_check
          %p425 = pneg %p180
        $region34: #{tpu_custom_call.1} parent=15 // pred_check_branch
          %427 = sbr.rel (%p425) target = $region36
        $region35: #{tpu_custom_call.1} parent=15 // pred_region
          %s428 = sand.u32 %s34, 1
          %s429 = scalar_lea.sflag [#allocation9], %s428
          %s430 = sand.u32 %s170, 1
          %s431 = smul.addr %s430, 2
          %s432 = scalar_lea.vmem [#allocation10], %s431
          %434 = vsyncadd %s429, 0
          %s435 = sadd.s32 %s42, %s41
          %s436 = smul.addr %s435, 2
          %s437 = scalar_lea.hbm %s4, %s436
          %s439 = sshll.u32 %s437, 4
          %s440 = int_to_ptr.hbm [resolvable:$true] %s439
          %s441 = sshll.u32 %s432, 4
          %s442 = int_to_ptr.vmem [resolvable:$true] %s441
          %444 = dma.hbm_to_vmem [thread:$0]  %s440, 32, %s442, %s429
        $region36: #{tpu_custom_call.1} parent=15 // pred_fallthru
          _
        // Predicated region
        $region37: #{tpu_custom_call.1} parent=15 // pred_check
          %p445 = pneg %p208
        $region38: #{tpu_custom_call.1} parent=15 // pred_check_branch
          %447 = sbr.rel (%p445) target = $region40
        $region39: #{tpu_custom_call.1} parent=15 // pred_region
          %p448 = scmp.lt.s32.totalorder %s41, 1
          %s449 = scalar_select %p448, %s41, 1
          %p450 = scmp.lt.s32.totalorder %s42, 0
          %s451 = scalar_select %p450, %s42, 0
          %s452 = sadd.s32 %s451, %s449
          %s453 = smul.addr %s452, 2
          %s454 = scalar_lea.vmem %s5, %s453
        $region40: #{tpu_custom_call.1} parent=15 // pred_fallthru
          _
        // Predicated region
        $region41: #{tpu_custom_call.1} parent=15 // pred_check
          %p455 = pneg %p236
        $region42: #{tpu_custom_call.1} parent=15 // pred_check_branch
          %457 = sbr.rel (%p455) target = $region44
        $region43: #{tpu_custom_call.1} parent=15 // pred_region
          %s458 = sand.u32 %s226, 1
          %s459 = scalar_lea.sflag [#allocation12], %s458
          %s460 = sand.u32 %s226, 1
          %s461 = smul.addr %s460, 2
          %s462 = scalar_lea.vmem [#allocation11], %s461
          %464 = vsyncadd %s459, 0
          %s465 = sadd.s32 %s42, %s41
          %s466 = smul.addr %s465, 2
          %s467 = scalar_lea.hbm %s6, %s466
          %s469 = sshll.u32 %s467, 4
          %s470 = int_to_ptr.hbm [resolvable:$true] %s469
          %s471 = sshll.u32 %s462, 4
          %s472 = int_to_ptr.vmem [resolvable:$true] %s471
          %474 = dma.hbm_to_vmem [thread:$0]  %s470, 32, %s472, %s459
        $region44: #{tpu_custom_call.1} parent=15 // pred_fallthru
          _
      $region16: #{tpu_custom_call.1} parent=5 // pred_fallthru
        _
      %p475 = scmp.le.s32.totalorder 1, %s34
      %p476 = scmp.lt.s32.totalorder %s34, 3
      %p477 = pnand %p475, %p476
      %p478 = pneg %p477
      // Predicated region
      $region45: #{tpu_custom_call.1} parent=5 // pred_check
        _
      $region46: #{tpu_custom_call.1} parent=5 // pred_check_branch
        %480 = sbr.rel (%p477) target = $region48
      $region47: #{tpu_custom_call.1} parent=5 // pred_region
        %s481 = ssub.s32 %s34, 1
        %s482 = sand.u32 %s61, 1
        %s483 = scalar_lea.sflag [#allocation3], %s482
        %s484 = sand.u32 %s61, 1
        %s485 = smul.addr %s484, 2
        %s486 = scalar_lea.vmem [#allocation2], %s485
        // Predicated region
        $region49: #{tpu_custom_call.1} parent=47 // pred_check
          %p487 = pneg %p74
        $region50: #{tpu_custom_call.1} parent=47 // pred_check_branch
          %489 = sbr.rel (%p487) target = $region52
        $region51: #{tpu_custom_call.1} parent=47 // pred_region
          %491 = dma.done %s483, 32
        $region52: #{tpu_custom_call.1} parent=47 // pred_fallthru
          _
        %s492 = sand.u32 %s39, 1
        %s493 = scalar_lea.sflag [#allocation6], %s492
        %s494 = sand.u32 %s89, 1
        %s495 = smul.addr %s494, 2
        %s496 = scalar_lea.vmem [#allocation5], %s495
        // Predicated region
        $region53: #{tpu_custom_call.1} parent=47 // pred_check
          %p497 = pneg %p102
        $region54: #{tpu_custom_call.1} parent=47 // pred_check_branch
          %499 = sbr.rel (%p497) target = $region56
        $region55: #{tpu_custom_call.1} parent=47 // pred_region
          %501 = dma.done %s493, 32
        $region56: #{tpu_custom_call.1} parent=47 // pred_fallthru
          _
        %s502 = sand.u32 %s39, 1
        %s503 = scalar_lea.sflag [#allocation6], %s502
        %s504 = sand.u32 %s117, 1
        %s505 = smul.addr %s504, 8
        %s506 = scalar_lea.vmem [#allocation7], %s505
        // Predicated region
        $region57: #{tpu_custom_call.1} parent=47 // pred_check
          %p507 = pneg %p130
        $region58: #{tpu_custom_call.1} parent=47 // pred_check_branch
          %509 = sbr.rel (%p507) target = $region60
        $region59: #{tpu_custom_call.1} parent=47 // pred_region
          %511 = dma.done %s503, 128
        $region60: #{tpu_custom_call.1} parent=47 // pred_fallthru
          _
        %s512 = sand.u32 %s39, 1
        %s513 = scalar_lea.sflag [#allocation9], %s512
        %s514 = sand.u32 %s145, 1
        %s515 = smul.addr %s514, 8
        %s516 = scalar_lea.vmem [#allocation8], %s515
        // Predicated region
        $region61: #{tpu_custom_call.1} parent=47 // pred_check
          %p517 = pneg %p158
        $region62: #{tpu_custom_call.1} parent=47 // pred_check_branch
          %519 = sbr.rel (%p517) target = $region64
        $region63: #{tpu_custom_call.1} parent=47 // pred_region
          %521 = dma.done %s513, 128
        $region64: #{tpu_custom_call.1} parent=47 // pred_fallthru
          _
        %s522 = sand.u32 %s39, 1
        %s523 = scalar_lea.sflag [#allocation9], %s522
        %s524 = sand.u32 %s173, 1
        %s525 = smul.addr %s524, 2
        %s526 = scalar_lea.vmem [#allocation10], %s525
        // Predicated region
        $region65: #{tpu_custom_call.1} parent=47 // pred_check
          %p527 = pneg %p186
        $region66: #{tpu_custom_call.1} parent=47 // pred_check_branch
          %529 = sbr.rel (%p527) target = $region68
        $region67: #{tpu_custom_call.1} parent=47 // pred_region
          %531 = dma.done %s523, 32
        $region68: #{tpu_custom_call.1} parent=47 // pred_fallthru
          _
        %s532 = sand.u32 %s229, 1
        %s533 = scalar_lea.sflag [#allocation12], %s532
        %s534 = sand.u32 %s229, 1
        %s535 = smul.addr %s534, 2
        %s536 = scalar_lea.vmem [#allocation11], %s535
        // Predicated region
        $region69: #{tpu_custom_call.1} parent=47 // pred_check
          %p537 = pneg %p242
        $region70: #{tpu_custom_call.1} parent=47 // pred_check_branch
          %539 = sbr.rel (%p537) target = $region72
        $region71: #{tpu_custom_call.1} parent=47 // pred_region
          %541 = dma.done %s533, 32
        $region72: #{tpu_custom_call.1} parent=47 // pred_fallthru
          _
        %s542 = sand.u32 %s61, 1
        %s543 = scalar_lea.sflag [#allocation3], %s542
        %s544 = sand.u32 %s61, 1
        %s545 = smul.addr %s544, 2
        %s546 = scalar_lea.vmem [#allocation2], %s545
        %p547 = pneg %p74
        %p548 = pneg %p71
        %s549 = sand.u32 %s39, 1
        %s550 = scalar_lea.sflag [#allocation6], %s549
        %s551 = sand.u32 %s89, 1
        %s552 = smul.addr %s551, 2
        %s553 = scalar_lea.vmem [#allocation5], %s552
        %p554 = pneg %p102
        %p555 = pneg %p99
        %s556 = sand.u32 %s39, 1
        %s557 = scalar_lea.sflag [#allocation6], %s556
        %s558 = sand.u32 %s117, 1
        %s559 = smul.addr %s558, 8
        %s560 = scalar_lea.vmem [#allocation7], %s559
        %p561 = pneg %p130
        %p562 = pneg %p127
        %s563 = sand.u32 %s39, 1
        %s564 = scalar_lea.sflag [#allocation9], %s563
        %s565 = sand.u32 %s145, 1
        %s566 = smul.addr %s565, 8
        %s567 = scalar_lea.vmem [#allocation8], %s566
        %p568 = pneg %p158
        %p569 = pneg %p155
        %s570 = sand.u32 %s39, 1
        %s571 = scalar_lea.sflag [#allocation9], %s570
        %s572 = sand.u32 %s173, 1
        %s573 = smul.addr %s572, 2
        %s574 = scalar_lea.vmem [#allocation10], %s573
        %p575 = pneg %p186
        %p576 = pneg %p183
        %p577 = scmp.lt.s32.totalorder %s43, 1
        %s578 = scalar_select %p577, %s43, 1
        %p579 = scmp.lt.s32.totalorder %s44, 0
        %s580 = scalar_select %p579, %s44, 0
        %s581 = sadd.s32 %s580, %s578
        %s582 = smul.addr %s581, 2
        %s583 = scalar_lea.vmem %s5, %s582
        %p584 = pneg %p214
        %p585 = pneg %p211
        %s586 = sand.u32 %s229, 1
        %s587 = scalar_lea.sflag [#allocation12], %s586
        %s588 = sand.u32 %s229, 1
        %s589 = smul.addr %s588, 2
        %s590 = scalar_lea.vmem [#allocation11], %s589
        %p591 = pneg %p242
        %p592 = pneg %p239
        %p593 = pneg %p268
        %p594 = pneg %p265
        %s595 = sand.u32 %s255, 1
        %s596 = scalar_lea.sflag [#allocation4], %s595
        %s597 = sand.u32 %s255, 1
        %s598 = smul.addr %s597, 8
        %s599 = scalar_lea.vmem [#allocation13], %s598
        %p600 = pneg %p294
        %p601 = pneg %p291
        %s602 = sand.u32 %s39, 1
        %s603 = scalar_lea.sflag [#allocation15], %s602
        %s604 = sand.u32 %s281, 1
        %s605 = smul.addr %s604, 8
        %s606 = scalar_lea.vmem [#allocation14], %s605
        %p607 = pneg %p320
        %p608 = pneg %p317
        %s609 = sand.u32 %s39, 1
        %s610 = scalar_lea.sflag [#allocation15], %s609
        %s611 = sand.u32 %s307, 1
        %s612 = smul.addr %s611, 8
        %s613 = scalar_lea.vmem [#allocation16], %s612
        %p614 = scmp.lt.s32.totalorder %s43, 1
        %s615 = scalar_select %p614, %s43, 1
        %p616 = scmp.lt.s32.totalorder %s44, 0
        %s617 = scalar_select %p616, %s44, 0
        %s618 = sadd.s32 %s617, %s615
        %s619 = smul.addr %s618, 2
        %s620 = scalar_lea.vmem %s5, %s619
        %p621 = scmp.eq.s32.totalorder %s44, 0
        // Predicated region
        $region73: #{tpu_custom_call.1} parent=47 // pred_check
          %p622 = pneg %p621
        $region74: #{tpu_custom_call.1} parent=47 // pred_check_branch
          %624 = sbr.rel (%p622) target = $region76
        $region75: #{tpu_custom_call.1} parent=47 // pred_region
          %625 = vst [vmem:[%s599] sm:$0xff] 0.0
          %626 = vst [vmem:[%s606] sm:$0xff] 0.0
          %627 = vst [vmem:[%s613] sm:$0xff] 0.0
        $region76: #{tpu_custom_call.1} parent=47 // pred_fallthru
          _
        %v628 = vld [vmem:[%s486] sm:$0x3]
        %v629 = vld [vmem:[%s496] sm:$0x3]
        %v630 = vld [vmem:[%s536] sm:$0x3]
        %v631 = vlog2.pop %v628
        %v632 = vmul.f32 %v631, 0.6931472
        %v633 = vmax.f32 %v632, -100.0
        %v634 = vsub.f32 1.0, %v628
        %v635 = vlog2.pop %v634
        %v636 = vmul.f32 %v635, 0.6931472
        %v637 = vmax.f32 %v636, -100.0
        %v638 = vmul.f32 %v629, %v633
        %v639 = vsub.f32 1.0, %v629
        %v640 = vmul.f32 %v639, %v637
        %v641 = vadd.f32 %v638, %v640
        %v642 = vsub.f32 0.0, %v641
        %v643 = vld [vmem:[%s506] sm:$0x3]
        %s644 = scalar_lea.vmem %s506, 2 [#allocation7]
        %v645 = vld [vmem:[%s644] sm:$0x3]
        %s646 = scalar_lea.vmem %s506, 4 [#allocation7]
        %v647 = vld [vmem:[%s646] sm:$0x3]
        %s648 = scalar_lea.vmem %s506, 6 [#allocation7]
        %v649 = vld [vmem:[%s648] sm:$0x3]
        %v650 = vld [vmem:[%s516] sm:$0x3]
        %s651 = scalar_lea.vmem %s516, 2 [#allocation8]
        %v652 = vld [vmem:[%s651] sm:$0x3]
        %s653 = scalar_lea.vmem %s516, 4 [#allocation8]
        %v654 = vld [vmem:[%s653] sm:$0x3]
        %s655 = scalar_lea.vmem %s516, 6 [#allocation8]
        %v656 = vld [vmem:[%s655] sm:$0x3]
        %v657 = vadd.f32 %v650, %v652
        %v658 = vadd.f32 %v654, %v656
        %v659 = vmul.f32 %v657, %v658
        %v660 = vadd.f32 %v643, %v645
        %v661 = vadd.f32 %v647, %v649
        %v662 = vmul.f32 %v660, %v661
        %v663 = vmin.f32 %v650, %v643
        %v664 = vmin.f32 %v652, %v645
        %v665 = vadd.f32 %v663, %v664
        %v666 = vmin.f32 %v654, %v647
        %v667 = vmin.f32 %v656, %v649
        %v668 = vadd.f32 %v666, %v667
        %v669 = vmul.f32 %v665, %v668
        %v670 = vadd.f32 %v659, %v662
        %v671 = vsub.f32 %v670, %v669
        %v672 = vadd.f32 %v669, 1.0
        %v673 = vadd.f32 %v671, 1.0
        %v674 = vrcp.pop %v673
        %v675 = vmul.f32 %v673, %v674
        %v676 = vsub.f32 1.0, %v675
        %v677 = vmul.f32 %v674, %v676
        %v678 = vadd.f32 %v674, %v677
        %vm679 = vweird.f32 %v673
        %vm680 = vweird.f32 %v674
        %vm681 = vmor %vm679, %vm680
        %v682 = vsel %vm681, %v674, %v678
        %v683 = vand.u32 2147483647, %v673
        %vm684 = vcmp.eq.f32.partialorder %v683, 8.507059e+37
        %v685 = vand.u32 %v673, 2147483648
        %v686 = vor.u32 1.1754944e-38, %v685
        %v687 = vsel %vm684, %v686, %v682
        %v688 = vmul.f32 %v672, %v687
        %v689 = vlog2.pop %v688
        %v690 = vmul.f32 %v689, 0.6931472
        %v691 = vsub.f32 0.0, %v690
        %v692 = vld [vmem:[%s526] sm:$0x3]
        %v693 = vld [vmem:[%s620] sm:$0x3]
        %v694 = vsub.f32 %v692, %v693
        %v695 = vand.u32 2147483647, %v694
        %vm696 = vcmp.le.f32.partialorder %v695, 0.7853982
        %vm697 = vcmp.lt.s32.totalorder %v694, 0
        %v698 = vand.u32 %v694, 2139095040
        %v699 = vshrl.u32 %v698, 23
        %v700 = vsub.s32 %v699, 127
        %v701 = vand.u32 2147483647, %v694
        %v702 = vand.u32 %v701, 8388607
        %v703 = vor.u32 %v702, 8388608
        %v704 = vsub.s32 0, %v703
        %v705 = vadd.s32 %v700, 1
        %vm706 = vcmp.gt.s32.totalorder %v705, 0
        %v707 = vsel %vm706, %v705, 0
        %v708 = vshrl.u32 %v707, 5
        %v709 = vand.u32 %v707, 31
        %v710 = vsub.s32 32, %v709
        %v711 = vshrl.u32 683565275, %v710
        %v712 = vshll.u32 683565275, %v709
        %v713 = vshrl.u32 2475754826, %v710
        %v714 = vor.u32 %v712, %v713
        %v715 = vshll.u32 2475754826, %v709
        %v716 = vshrl.u32 2131351028, %v710
        %v717 = vor.u32 %v715, %v716
        %v718 = vshll.u32 2131351028, %v709
        %v719 = vshrl.u32 2102212464, %v710
        %v720 = vor.u32 %v718, %v719
        %v721 = vshll.u32 2102212464, %v709
        %v722 = vshrl.u32 920167782, %v710
        %v723 = vor.u32 %v721, %v722
        %v724 = vshll.u32 920167782, %v709
        %v725 = vshrl.u32 1326507024, %v710
        %v726 = vor.u32 %v724, %v725
        %vm727 = vcmp.lt.s32.totalorder %v708, 1
        %vm728 = vcmp.lt.s32.totalorder %v708, 2
        %vm729 = vcmp.lt.s32.totalorder %v708, 3
        %vm730 = vcmp.lt.s32.totalorder %v708, 4
        %v731 = vsel %vm727, %v711, %v714
        %v732 = vsel %vm730, %v720, 2102212464
        %v733 = vsel %vm729, %v717, %v732
        %v734 = vsel %vm728, %v731, %v733
        %v735 = vsel %vm727, %v714, %v717
        %v736 = vsel %vm730, %v723, 920167782
        %v737 = vsel %vm729, %v720, %v736
        %v738 = vsel %vm728, %v735, %v737
        %v739 = vsel %vm727, %v717, %v720
        %v740 = vsel %vm730, %v726, 1326507024
        %v741 = vsel %vm729, %v723, %v740
        %v742 = vsel %vm728, %v739, %v741
        %v743 = vshll.u32 %v703, 8
        %v744 = vand.u32 %v743, 65535
        %v745 = vshrl.u32 %v743, 16
        %v746 = vand.u32 %v742, 65535
        %v747 = vshrl.u32 %v742, 16
        %v748 = vmul.u32 %v744, %v746
        %v749 = vmul.u32 %v744, %v747
        %v750 = vmul.u32 %v745, %v746
        %v751 = vmul.u32 %v745, %v747
        %v752 = vshll.u32 %v749, 16
        %v753 = vshrl.u32 %v749, 16
        %v754 = vshll.u32 %v750, 16
        %v755 = vshrl.u32 %v750, 16
        %vm756 = vc.u32 %v748, %v752
        %v757 = vsel %vm756, 1, 0
        %v758 = vadd.s32 %v748, %v752
        %v759 = vadd.s32 %v751, %v757
        %vm760 = vc.u32 %v758, %v754
        %v761 = vsel %vm760, 1, 0
        %v762 = vadd.s32 %v758, %v754
        %v763 = vadd.s32 %v759, %v761
        %v764 = vadd.s32 %v763, %v753
        %v765 = vadd.s32 %v764, %v755
        %v766 = vand.u32 %v743, 65535
        %v767 = vshrl.u32 %v743, 16
        %v768 = vand.u32 %v738, 65535
        %v769 = vshrl.u32 %v738, 16
        %v770 = vmul.u32 %v766, %v768
        %v771 = vmul.u32 %v766, %v769
        %v772 = vmul.u32 %v767, %v768
        %v773 = vmul.u32 %v767, %v769
        %v774 = vshll.u32 %v771, 16
        %v775 = vshrl.u32 %v771, 16
        %v776 = vshll.u32 %v772, 16
        %v777 = vshrl.u32 %v772, 16
        %vm778 = vc.u32 %v770, %v774
        %v779 = vsel %vm778, 1, 0
        %v780 = vadd.s32 %v770, %v774
        %v781 = vadd.s32 %v773, %v779
        %vm782 = vc.u32 %v780, %v776
        %v783 = vsel %vm782, 1, 0
        %v784 = vadd.s32 %v780, %v776
        %v785 = vadd.s32 %v781, %v783
        %v786 = vadd.s32 %v785, %v775
        %v787 = vadd.s32 %v786, %v777
        %v788 = vmul.u32 %v743, %v734
        %v789 = vadd.s32 %v765, %v784
        %vm790 = vc.u32 %v765, %v784
        %v791 = vadd.s32 %v787, 1
        %v792 = vsel %vm790, %v791, %v787
        %v793 = vadd.s32 %v788, %v792
        %v794 = vadd.s32 %v793, 536870912
        %v795 = vshrl.u32 %v794, 30
        %v796 = vshll.u32 %v795, 30
        %v797 = vsub.s32 %v793, %v796
        %vm798 = vcmp.lt.s32.totalorder %v797, 0
        %v799 = vsub.s32 0, %v797
        %v800 = vsel %vm798, %v799, %v797
        %v801 = vclz %v800
        %v802 = vsub.s32 %v801, 2
        %vm803 = vcmp.gt.s32.totalorder 0, %v802
        %v804 = vsel %vm803, 0, %v802
        %v805 = vsub.s32 32, %v804
        %v806 = vshll.u32 %v797, %v804
        %v807 = vshrl.u32 %v789, %v805
        %v808 = vor.u32 %v806, %v807
        %v809 = vsub.s32 4294967266, %v804
        %v810 = vadd.s32 %v809, 127
        %v811 = vshll.u32 %v810, 23
        %v812 = vor.u32 4788187, %v811
        %v813 = vand.u32 2147483647, %v812
        %v815 = vcvt.s32.f32 %v808
        %v816 = vmul.f32 %v815, %v813
        %v817 = vxor.u32 %v816, 2147483648
        %v818 = vsel %vm697, %v817, %v816
        %v819 = vsub.s32 4, %v795
        %v820 = vsel %vm697, %v819, %v795
        %v821 = vsel %vm696, %v694, %v818
        %v822 = vsel %vm696, 0, %v820
        %v823 = vmul.f32 %v821, %v821
        %v824 = vmul.f32 %v823, -0.001358992
        %v825 = vadd.f32 %v824, 0.041655596
        %v826 = vmul.f32 %v823, %v825
        %v827 = vadd.f32 %v826, -0.4999988
        %v828 = vmul.f32 %v823, %v827
        %v829 = vadd.f32 1.0, %v828
        %v830 = vmul.f32 %v821, %v821
        %v831 = vmul.f32 %v830, -0.00019511016
        %v832 = vadd.f32 %v831, 0.008332121
        %v833 = vmul.f32 %v830, %v832
        %v834 = vadd.f32 %v833, -0.16666654
        %v835 = vmul.f32 %v830, %v834
        %v836 = vadd.f32 %v835, 1.0
        %v837 = vmul.f32 %v836, %v821
        %vm838 = vweird.f32 %v694
        %v839 = vand.u32 %v822, 3
        %vm840 = vcmp.lt.s32.totalorder %v839, 2
        %vm841 = vcmp.eq.s32.totalorder %v839, 0
        %v842 = vxor.u32 %v837, 2147483648
        %v843 = vsel %vm841, %v829, %v842
        %vm844 = vcmp.eq.s32.totalorder %v839, 2
        %v845 = vxor.u32 %v829, 2147483648
        %v846 = vsel %vm844, %v845, %v837
        %v847 = vsel %vm840, %v843, %v846
        %v848 = vsel %vm838, nan, %v847
        %v849 = vsub.f32 1.0, %v848
        %v850 = vmul.f32 %v849, 10.0
        %v851 = vadd.f32 %v691, %v850
        %v852 = vmul.f32 %v642, %v630
        %v853 = vld [vmem:[%s599] sm:$0x1]
        %vm854 = vcmask 1041408
        %v855 = vsel %vm854, %v852, 0.0
        %v856 = vrot.slane %v855, 4
        %v857 = vadd.f32 %v855, %v856
        %v858 = vrot.slane %v857, 2
        %v859 = vadd.f32 %v857, %v858
        %v860 = vrot.slane %v859, 1
        %v861 = vadd.f32 %v859, %v860
        %v862 = vadd.f32 %v853, %v861
        %863 = vst [vmem:[%s599] sm:$0x1] %v862
        %v864 = vmul.f32 %v851, %v630
        %v865 = vld [vmem:[%s606] sm:$0x1]
        %v866 = vsel %vm854, %v864, 0.0
        %v867 = vrot.slane %v866, 4
        %v868 = vadd.f32 %v866, %v867
        %v869 = vrot.slane %v868, 2
        %v870 = vadd.f32 %v868, %v869
        %v871 = vrot.slane %v870, 1
        %v872 = vadd.f32 %v870, %v871
        %v873 = vadd.f32 %v865, %v872
        %874 = vst [vmem:[%s606] sm:$0x1] %v873
        %v875 = vld [vmem:[%s613] sm:$0x1]
        %v876 = vsel %vm854, %v630, 0.0
        %v877 = vrot.slane %v876, 4
        %v878 = vadd.f32 %v876, %v877
        %v879 = vrot.slane %v878, 2
        %v880 = vadd.f32 %v878, %v879
        %v881 = vrot.slane %v880, 1
        %v882 = vadd.f32 %v880, %v881
        %v883 = vadd.f32 %v875, %v882
        %884 = vst [vmem:[%s613] sm:$0x1] %v883
        %s885 = sand.u32 %s255, 1
        %s886 = scalar_lea.sflag [#allocation4], %s885
        %s887 = sand.u32 %s255, 1
        %s888 = smul.addr %s887, 8
        %s889 = scalar_lea.vmem [#allocation13], %s888
        %s890 = sand.u32 %s39, 1
        %s891 = scalar_lea.sflag [#allocation15], %s890
        %s892 = sand.u32 %s281, 1
        %s893 = smul.addr %s892, 8
        %s894 = scalar_lea.vmem [#allocation14], %s893
        %s895 = sand.u32 %s39, 1
        %s896 = scalar_lea.sflag [#allocation15], %s895
        %s897 = sand.u32 %s307, 1
        %s898 = smul.addr %s897, 8
        %s899 = scalar_lea.vmem [#allocation16], %s898
        // Predicated region
        $region77: #{tpu_custom_call.1} parent=47 // pred_check
          %p900 = pneg %p265
        $region78: #{tpu_custom_call.1} parent=47 // pred_check_branch
          %902 = sbr.rel (%p900) target = $region80
        $region79: #{tpu_custom_call.1} parent=47 // pred_region
          %904 = vsyncadd %s886, 0
          %s905 = smul.addr %s43, 8
          %s906 = scalar_lea.hbm %s7, %s905
          %s908 = sshll.u32 %s889, 4
          %s909 = int_to_ptr.vmem [resolvable:$true] %s908
          %s910 = sshll.u32 %s906, 4
          %s911 = int_to_ptr.hbm [resolvable:$true] %s910
          %913 = dma.vmem_to_hbm [thread:$0]  %s909, 128, %s911, %s886
        $region80: #{tpu_custom_call.1} parent=47 // pred_fallthru
          _
        // Predicated region
        $region81: #{tpu_custom_call.1} parent=47 // pred_check
          %p914 = pneg %p291
        $region82: #{tpu_custom_call.1} parent=47 // pred_check_branch
          %916 = sbr.rel (%p914) target = $region84
        $region83: #{tpu_custom_call.1} parent=47 // pred_region
          %918 = vsyncadd %s891, 0
          %s919 = smul.addr %s43, 8
          %s920 = scalar_lea.hbm %s8, %s919
          %s922 = sshll.u32 %s894, 4
          %s923 = int_to_ptr.vmem [resolvable:$true] %s922
          %s924 = sshll.u32 %s920, 4
          %s925 = int_to_ptr.hbm [resolvable:$true] %s924
          %927 = dma.vmem_to_hbm [thread:$0]  %s923, 128, %s925, %s891
        $region84: #{tpu_custom_call.1} parent=47 // pred_fallthru
          _
        // Predicated region
        $region85: #{tpu_custom_call.1} parent=47 // pred_check
          %p928 = pneg %p317
        $region86: #{tpu_custom_call.1} parent=47 // pred_check_branch
          %930 = sbr.rel (%p928) target = $region88
        $region87: #{tpu_custom_call.1} parent=47 // pred_region
          %932 = vsyncadd %s896, 0
          %s933 = smul.addr %s43, 8
          %s934 = scalar_lea.hbm %s9, %s933
          %s936 = sshll.u32 %s899, 4
          %s937 = int_to_ptr.vmem [resolvable:$true] %s936
          %s938 = sshll.u32 %s934, 4
          %s939 = int_to_ptr.hbm [resolvable:$true] %s938
          %941 = dma.vmem_to_hbm [thread:$0]  %s937, 128, %s939, %s896
        $region88: #{tpu_custom_call.1} parent=47 // pred_fallthru
          _
      $region48: #{tpu_custom_call.1} parent=5 // pred_fallthru
        _
      %p942 = scmp.le.s32.totalorder 2, %s34
      // Predicated region
      $region89: #{tpu_custom_call.1} parent=5 // pred_check
        %p943 = pneg %p942
      $region90: #{tpu_custom_call.1} parent=5 // pred_check_branch
        %945 = sbr.rel (%p943) target = $region92
      $region91: #{tpu_custom_call.1} parent=5 // pred_region
        %s946 = ssub.s32 %s34, 2
        // Predicated region
        $region93: #{tpu_custom_call.1} parent=91 // pred_check
          %p947 = pneg %p271
        $region94: #{tpu_custom_call.1} parent=91 // pred_check_branch
          %949 = sbr.rel (%p947) target = $region96
        $region95: #{tpu_custom_call.1} parent=91 // pred_region
          %s950 = sand.u32 %s256, 1
          %s951 = scalar_lea.sflag [#allocation4], %s950
          %s952 = sand.u32 %s256, 1
          %s953 = smul.addr %s952, 8
          %s954 = scalar_lea.vmem [#allocation13], %s953
          %956 = dma.done %s951, 128
        $region96: #{tpu_custom_call.1} parent=91 // pred_fallthru
          _
        // Predicated region
        $region97: #{tpu_custom_call.1} parent=91 // pred_check
          %p957 = pneg %p297
        $region98: #{tpu_custom_call.1} parent=91 // pred_check_branch
          %959 = sbr.rel (%p957) target = $region100
        $region99: #{tpu_custom_call.1} parent=91 // pred_region
          %s960 = sand.u32 %s40, 1
          %s961 = scalar_lea.sflag [#allocation15], %s960
          %s962 = sand.u32 %s282, 1
          %s963 = smul.addr %s962, 8
          %s964 = scalar_lea.vmem [#allocation14], %s963
          %966 = dma.done %s961, 128
        $region100: #{tpu_custom_call.1} parent=91 // pred_fallthru
          _
        // Predicated region
        $region101: #{tpu_custom_call.1} parent=91 // pred_check
          %p967 = pneg %p323
        $region102: #{tpu_custom_call.1} parent=91 // pred_check_branch
          %969 = sbr.rel (%p967) target = $region104
        $region103: #{tpu_custom_call.1} parent=91 // pred_region
          %s970 = sand.u32 %s40, 1
          %s971 = scalar_lea.sflag [#allocation15], %s970
          %s972 = sand.u32 %s308, 1
          %s973 = smul.addr %s972, 8
          %s974 = scalar_lea.vmem [#allocation16], %s973
          %976 = dma.done %s971, 128
        $region104: #{tpu_custom_call.1} parent=91 // pred_fallthru
          _
      $region92: #{tpu_custom_call.1} parent=5 // pred_fallthru
        _
    $region6: #{tpu_custom_call.1} parent=1 // loop_footer
      %s38 = sadd.s32 1, %s34
    $region7: #{tpu_custom_call.1} parent=1 // loop_footer_branch
      %33 = sbr.rel target = $region3
    $region8: #{tpu_custom_call.1} parent=1 // loop_exit
      _
    %977 = vsyncpa [#allocation3], 1
    %s978 = scalar_lea.sflag [#allocation3], 1
    %979 = vsyncpa %s978, 1
    %980 = vsyncpa [#allocation6], 1
    %s981 = scalar_lea.sflag [#allocation6], 1
    %982 = vsyncpa %s981, 1
    %983 = vsyncpa [#allocation9], 1
    %s984 = scalar_lea.sflag [#allocation9], 1
    %985 = vsyncpa %s984, 1
    %986 = vsyncpa [#allocation12], 1
    %s987 = scalar_lea.sflag [#allocation12], 1
    %988 = vsyncpa %s987, 1
    %989 = vsyncpa [#allocation4], 1
    %s990 = scalar_lea.sflag [#allocation4], 1
    %991 = vsyncpa %s990, 1
    %992 = vsyncpa [#allocation15], 1
    %s993 = scalar_lea.sflag [#allocation15], 1
    %994 = vsyncpa %s993, 1

</llo_original>
